<compile_context>
chip_gen: v7x
topology: tpu7x:2x2x1
jax: 0.10.0
libtpu: 0.0.40
codegen_flags: <defaults>
</compile_context>

<pallas_src>
import functools

import jax
import jax.numpy as jnp
import numpy as np
from jax.experimental import pallas as pl
from jax.experimental.pallas import tpu as pltpu


def _round_up(x, m):
    return (x + m - 1) // m * m


# ------------------------------ Pallas kernel ------------------------------ #

def _rvq_list_kernel(z_ref, w_in_t_ref, b_in_ref, cb_ref, cbn_t_ref,
                     w_out_t_ref, b_out_ref,
                     zq_ref, codes_ref, errsum_ref,
                     res_scr, *, num_valid_rows=None):
    """Grid = (G, BT tiles, N codebooks); codebook axis innermost ("arbitrary").

    Kernel refs (group dim squeezed; weights carry the full N axis, resident
    in VMEM across all token tiles of a group):
      z_ref        [tile, D]     f32   input latents for this (group, tile)
      w_in_t_ref   [N, D, Cd]    bf16  weight-normed in_proj weights, transposed
      b_in_ref     [N, 1, Cd]    f32
      cb_ref       [N, Cs, Cd]   bf16  raw codebooks (for gather / losses)
      cbn_t_ref    [N, Cd, Cs]   bf16  L2-normalized codebooks, transposed
      w_out_t_ref  [N, Cd, D]    bf16  weight-normed out_proj weights, transposed
      b_out_ref    [N, 1, D]     f32
      zq_ref       [tile, D]     f32   out: sum over codebooks of z_q_i
      codes_ref    [tile, N]     i32   out: code index per codebook (column n)
      errsum_ref   [8, 128]      f32   out: per-codebook sum of squared errors
                                       for this tile (lane n, padded rows masked)
      res_scr      [tile, D]     f32   scratch: residual carried across codebooks
    """
    f32, bf16 = jnp.float32, jnp.bfloat16
    n = pl.program_id(2)

    @pl.when(n == 0)
    def _init():
        res_scr[...] = z_ref[...]
        zq_ref[...] = jnp.zeros_like(zq_ref)
        codes_ref[...] = jnp.zeros_like(codes_ref)
        errsum_ref[...] = jnp.zeros_like(errsum_ref)

    res = res_scr[...]                                                # [tile, D]

    # in_proj: 1x1 Conv1d == matmul (bf16 MXU operands, f32 accumulate).
    z_e = jnp.dot(res.astype(bf16), w_in_t_ref[n],
                  preferred_element_type=f32) + b_in_ref[n]           # [tile, Cd]

    # Nearest code: with an L2-normalized codebook, argmin dist == argmax of a
    # single similarity matmul (the positive per-row 1/||z_e|| scale does not
    # change the argmax), so enc^2 / cb^2 terms and normalizations are gone.
    sim = jnp.dot(z_e.astype(bf16), cbn_t_ref[n],
                  preferred_element_type=f32)                         # [tile, Cs]
    Cs = sim.shape[1]
    lane = jax.lax.broadcasted_iota(jnp.int32, sim.shape, 1)
    max_s = jnp.max(sim, axis=1, keepdims=True)
    idx = jnp.min(jnp.where(sim == max_s, lane, Cs),
                  axis=1, keepdims=True)                              # first argmax

    # codebook gather (un-normalized codebook, as decode_code) via one-hot MXU
    onehot = (lane == idx).astype(bf16)                               # [tile, Cs]
    z_eq = jnp.dot(onehot, cb_ref[n], preferred_element_type=f32)     # [tile, Cd]

    # commitment / codebook loss numerator: per-tile sum of squared errors,
    # reduced in-kernel (padded rows masked out before the sum).
    diff = z_e - z_eq
    per_row = jnp.sum(diff * diff, axis=1, keepdims=True)             # [tile, 1]
    if num_valid_rows is not None:
        tile = per_row.shape[0]
        row = (jax.lax.broadcasted_iota(jnp.int32, (tile, 1), 0)
               + pl.program_id(1) * tile)
        per_row = jnp.where(row < num_valid_rows, per_row, 0.0)
    tile_err = jnp.sum(per_row, axis=0, keepdims=True)                # [1, 1]

    # straight-through forward value is z_eq; out_proj back to D channels
    zq_n = jnp.dot(z_eq.astype(bf16), w_out_t_ref[n],
                   preferred_element_type=f32) + b_out_ref[n]         # [tile, D]

    # accumulate outputs (blocks are revisited across the codebook axis)
    col = jax.lax.broadcasted_iota(jnp.int32, codes_ref.shape, 1)     # [tile, N]
    codes_ref[...] = jnp.where(col == n, idx, codes_ref[...])
    err_lane = jax.lax.broadcasted_iota(jnp.int32, errsum_ref.shape, 1)
    errsum_ref[...] += jnp.where(err_lane == n, tile_err, 0.0)
    zq_ref[...] += zq_n

    # residual for the next codebook (stays resident in VMEM)
    res_scr[...] = res - zq_n


# --------------------------- tiling / VMEM derivation ----------------------- #

def _derive_tiling(BT, D, Cs, Cd, N, G, tile_bt, vmem_budget_bytes):
    """Pick the token-tile size and a scoped VMEM limit from a byte budget."""
    # resident, tile-independent bytes (double-buffered bf16 weights + f32 bias)
    fixed = (2 * N * (D * Cd + Cs * Cd + Cd * Cs + Cd * D) * 2
             + 2 * N * (Cd + D) * 4
             + 2 * 8 * 128 * 4)
    # per-token-row bytes: streamed in/out blocks, residual scratch, live temps
    per_row = (2 * 2 * D * 4            # z in + z_q out, double-buffered f32
               + 2 * 128 * 4            # codes block (lane-padded int32)
               + D * 4                  # residual scratch
               + (3 * Cs + 3 * 128) * 4)  # sim / one-hot / iota / small temps
    budget = max(vmem_budget_bytes - fixed, 8 * per_row)
    tile = min(int(tile_bt), _round_up(BT, 8),
               max(8, (budget // per_row) // 8 * 8))
    tile = max(tile, 8)
    num_tiles = (BT + tile - 1) // tile
    # keep >= 2 parallel blocks so both v7x TensorCores have work
    if G * num_tiles < 2 and BT > 8:
        tile = max(8, _round_up((BT + 1) // 2, 8))
        num_tiles = (BT + tile - 1) // tile
    est = fixed + tile * per_row
    vmem_limit = int(min(max(est + (8 << 20), 32 << 20), 100 << 20))
    return tile, num_tiles, vmem_limit


# ------------------------------ module wrapper ------------------------------ #

def improved_rvq_list_forward(z, params, n_active_cb=None, *, tile_bt=1024,
                              vmem_budget_bytes=24 * 1024 * 1024):
    """Eval-mode ImprovedRVQList forward.

    z: [B, G, D, T] (G = n_quantizers).
    Returns (z_q [B,G,D,T], codes [B,G,T,N], commit_loss, codebook_loss).
    """
    B, G, D, T = z.shape
    N_total = params["w_in_t"].shape[1]
    N = N_total if n_active_cb is None else int(min(n_active_cb, N_total))
    Cs = params["cb"].shape[2]
    Cd = params["cb"].shape[3]
    assert N <= 128, "per-codebook loss lanes assume n_codebooks <= 128"

    # eval-mode "break at i >= n_active_cb": use only the first N codebooks
    w_in_t = params["w_in_t"][:, :N]      # bf16 [G, N, D, Cd]
    b_in = params["b_in"][:, :N]          # f32  [G, N, 1, Cd]
    cb = params["cb"][:, :N]              # bf16 [G, N, Cs, Cd]
    cbn_t = params["cbn_t"][:, :N]        # bf16 [G, N, Cd, Cs]
    w_out_t = params["w_out_t"][:, :N]    # bf16 [G, N, Cd, D]
    b_out = params["b_out"][:, :N]        # f32  [G, N, 1, D]

    # token-major layout: rearrange('b g d t -> g (b t) d')
    BT = B * T
    z_gbt = jnp.transpose(z, (1, 0, 3, 2)).reshape(G, BT, D).astype(jnp.float32)

    tile, num_tiles, vmem_limit = _derive_tiling(
        BT, D, Cs, Cd, N, G, tile_bt, vmem_budget_bytes)
    BT_pad = num_tiles * tile
    if BT_pad != BT:
        z_gbt = jnp.pad(z_gbt, ((0, 0), (0, BT_pad - BT), (0, 0)))

    kernel = functools.partial(
        _rvq_list_kernel, num_valid_rows=(BT if BT_pad != BT else None))

    grid = (G, num_tiles, N)
    flops = 2 * G * N * BT_pad * (D * Cd + 2 * Cd * Cs + Cd * D)
    bytes_accessed = (4 * z_gbt.size
                      + 2 * (w_in_t.size + cb.size + cbn_t.size + w_out_t.size)
                      + 4 * (b_in.size + b_out.size)
                      + 4 * G * BT_pad * (D + N)
                      + 4 * G * num_tiles * 8 * 128)

    grid_spec = pltpu.PrefetchScalarGridSpec(
        num_scalar_prefetch=0,
        grid=grid,
        in_specs=[
            # streamed token tile (changes with i, held across n)
            pl.BlockSpec((None, tile, D), lambda g, i, n: (g, i, 0)),
            # weights: full-N blocks, index depends only on g -> VMEM-resident
            # across all token tiles and codebooks of the group
            pl.BlockSpec((None, N, D, Cd), lambda g, i, n: (g, 0, 0, 0)),
            pl.BlockSpec((None, N, 1, Cd), lambda g, i, n: (g, 0, 0, 0)),
            pl.BlockSpec((None, N, Cs, Cd), lambda g, i, n: (g, 0, 0, 0)),
            pl.BlockSpec((None, N, Cd, Cs), lambda g, i, n: (g, 0, 0, 0)),
            pl.BlockSpec((None, N, Cd, D), lambda g, i, n: (g, 0, 0, 0)),
            pl.BlockSpec((None, N, 1, D), lambda g, i, n: (g, 0, 0, 0)),
        ],
        out_specs=(
            pl.BlockSpec((None, tile, D), lambda g, i, n: (g, i, 0)),       # z_q
            pl.BlockSpec((None, tile, N), lambda g, i, n: (g, i, 0)),       # codes
            pl.BlockSpec((None, None, 8, 128), lambda g, i, n: (g, i, 0, 0)),  # err sums
        ),
        scratch_shapes=[pltpu.VMEM((tile, D), jnp.float32)],
    )

    zq_pad, codes_pad, errsum = pl.pallas_call(
        kernel,
        out_shape=(
            jax.ShapeDtypeStruct((G, BT_pad, D), jnp.float32),
            jax.ShapeDtypeStruct((G, BT_pad, N), jnp.int32),
            jax.ShapeDtypeStruct((G, num_tiles, 8, 128), jnp.float32),
        ),
        grid_spec=grid_spec,
        compiler_params=pltpu.CompilerParams(
            dimension_semantics=("parallel", "parallel", "arbitrary"),
            vmem_limit_bytes=vmem_limit,
        ),
        cost_estimate=pl.CostEstimate(flops=flops, transcendentals=0,
                                      bytes_accessed=bytes_accessed),
    )(z_gbt, w_in_t, b_in, cb, cbn_t, w_out_t, b_out)

    zq = zq_pad[:, :BT]        # [G, BT, D]
    codes = codes_pad[:, :BT]  # [G, BT, N]

    z_q = jnp.transpose(zq.reshape(G, B, T, D), (1, 0, 3, 2))        # [B, G, D, T]
    codes = jnp.transpose(codes.reshape(G, B, T, N), (1, 0, 2, 3))   # [B, G, T, N]

    # per-batch mean over (Cd, T), then mean over B, summed over layers/groups
    # == weighted total squared error / (B * Cd * T); the total per (g, n) was
    # reduced in-kernel, only the tiny per-tile sum + weighting happens here.
    layer_sums = jnp.sum(errsum[:, :, 0, :N], axis=1)                # [G, N]
    denom = float(B * Cd * T)
    commit_loss = jnp.sum(params["commit_w"][:, :N] * layer_sums) / denom
    codebook_loss = jnp.sum(params["cb_w"][:, :N] * layer_sums) / denom
    return z_q, codes, commit_loss, codebook_loss


# --------------------------- deterministic params --------------------------- #

def make_params(key, dim, n_quantizers, n_codebooks, codebook_size, codebook_dim,
                cb_loss_weight=1.0, commitment_weight=1.0):
    """Stacked eval-mode parameters [G, N, ...].  Weight-norm (dim=0) is folded
    into effective conv weights in f32; the L2-normalized + transposed codebook
    copy is precomputed once, and the kernel-facing weights are stored in bf16
    (cast once here instead of per grid step)."""
    G, N, Cs, Cd, D = n_quantizers, n_codebooks, codebook_size, codebook_dim, dim
    ks = jax.random.split(key, 7)
    v_in = 0.1 * jax.random.normal(ks[0], (G, N, Cd, D), jnp.float32)
    g_in = jax.random.uniform(ks[1], (G, N, Cd, 1), jnp.float32, 0.5, 1.5)
    b_in = 0.05 * jax.random.normal(ks[2], (G, N, 1, Cd), jnp.float32)
    v_out = 0.1 * jax.random.normal(ks[3], (G, N, D, Cd), jnp.float32)
    g_out = jax.random.uniform(ks[4], (G, N, D, 1), jnp.float32, 0.5, 1.5)
    b_out = 0.05 * jax.random.normal(ks[5], (G, N, 1, D), jnp.float32)
    cb = jax.random.normal(ks[6], (G, N, Cs, Cd), jnp.float32)

    def weight_norm(v, g):  # torch weight_norm default dim=0: per output row
        return g * v / jnp.sqrt(jnp.sum(v * v, axis=-1, keepdims=True))

    w_in = weight_norm(v_in, g_in)      # [G, N, Cd, D]
    w_out = weight_norm(v_out, g_out)   # [G, N, D, Cd]
    cbn = cb / jnp.maximum(jnp.linalg.norm(cb, axis=-1, keepdims=True), 1e-12)
    w_in_t = jnp.swapaxes(w_in, -1, -2)    # [G, N, D, Cd]
    w_out_t = jnp.swapaxes(w_out, -1, -2)  # [G, N, Cd, D]
    cbn_t = jnp.swapaxes(cbn, -1, -2)      # [G, N, Cd, Cs]
    return dict(
        # bf16 copies consumed by the kernel (halve weight DMA, no in-kernel cast)
        w_in_t=w_in_t.astype(jnp.bfloat16),
        cb=cb.astype(jnp.bfloat16),
        cbn_t=cbn_t.astype(jnp.bfloat16),
        w_out_t=w_out_t.astype(jnp.bfloat16),
        b_in=b_in,
        b_out=b_out,
        commit_w=jnp.full((G, N), commitment_weight, jnp.float32),
        cb_w=jnp.full((G, N), cb_loss_weight, jnp.float32),
        # f32 originals kept only for the literal f32 reference check
        w_in_t_f32=w_in_t, w_out_t_f32=w_out_t, cb_f32=cb,
    )


# ----------------------------- pure-JAX references -------------------------- #

def _reference_matched(z, params, N):
    """Mirrors the kernel's math exactly (same bf16 MXU operands, f32
    accumulation) so code indices can be compared exactly."""
    B, G, D, T = z.shape
    f32, bf16 = jnp.float32, jnp.bfloat16
    Cd = params["cb"].shape[3]
    zq_all, codes_all = [], []
    commit = jnp.float32(0.0)
    cbl = jnp.float32(0.0)
    for g in range(G):
        residual = jnp.transpose(z[:, g], (0, 2, 1)).reshape(B * T, D).astype(f32)
        z_q = jnp.zeros_like(residual)
        codes_g = []
        for n in range(N):
            z_e = jnp.dot(residual.astype(bf16), params["w_in_t"][g, n],
                          preferred_element_type=f32) + params["b_in"][g, n]
            sim = jnp.dot(z_e.astype(bf16), params["cbn_t"][g, n],
                          preferred_element_type=f32)
            idx = jnp.argmax(sim, axis=1).astype(jnp.int32)
            z_eq = params["cb"][g, n].astype(f32)[idx]
            err = jnp.sum((z_e - z_eq) ** 2)
            commit = commit + params["commit_w"][g, n] * err / (B * Cd * T)
            cbl = cbl + params["cb_w"][g, n] * err / (B * Cd * T)
            zq_n = jnp.dot(z_eq.astype(bf16), params["w_out_t"][g, n],
                           preferred_element_type=f32) + params["b_out"][g, n]
            z_q = z_q + zq_n
            residual = residual - zq_n
            codes_g.append(idx.reshape(B, T))
        zq_all.append(jnp.transpose(z_q.reshape(B, T, D), (0, 2, 1)))
        codes_all.append(jnp.stack(codes_g, axis=-1))
    return jnp.stack(zq_all, axis=1), jnp.stack(codes_all, axis=1), commit, cbl


def _reference_f32(z, params, N):
    """Literal f32 port of the PyTorch forward (normalized-distance argmin)."""
    B, G, D, T = z.shape
    Cd = params["cb_f32"].shape[3]
    commit, cbl = jnp.float32(0.0), jnp.float32(0.0)
    for g in range(G):
        residual = jnp.transpose(z[:, g], (0, 2, 1)).reshape(B * T, D)
        for n in range(N):
            z_e = residual @ params["w_in_t_f32"][g, n] + params["b_in"][g, n]
            enc = z_e / jnp.maximum(jnp.linalg.norm(z_e, axis=1, keepdims=True), 1e-12)
            cbk = params["cb_f32"][g, n]
            cbn = cbk / jnp.maximum(jnp.linalg.norm(cbk, axis=1, keepdims=True), 1e-12)
            dist = (jnp.sum(enc ** 2, 1, keepdims=True) - 2 * enc @ cbn.T
                    + jnp.sum(cbn ** 2, 1, keepdims=True).T)
            idx = jnp.argmax(-dist, axis=1)
            z_eq = cbk[idx]
            mse_b = jnp.mean(((z_e - z_eq) ** 2).reshape(B, T * Cd), axis=1)
            commit = commit + params["commit_w"][g, n] * jnp.mean(mse_b)
            cbl = cbl + params["cb_w"][g, n] * jnp.mean(mse_b)
            zq_n = z_eq @ params["w_out_t_f32"][g, n] + params["b_out"][g, n]
            residual = residual - zq_n
    return commit, cbl


# ---------------------------------- main ------------------------------------ #

if __name__ == "__main__":
    B, G, D, T = 2, 2, 32, 16           # z: [B, G=n_quantizers, D, T]
    n_codebooks, codebook_size, codebook_dim = 4, 64, 8

    key = jax.random.PRNGKey(0)
    kz, kp = jax.random.split(key)
    z = jax.random.normal(kz, (B, G, D, T), jnp.float32)
    params = make_params(kp, D, G, n_codebooks, codebook_size, codebook_dim)

    z_q, codes, commit_loss, codebook_loss = improved_rvq_list_forward(z, params)
    jax.block_until_ready(z_q)

    assert z_q.shape == (B, G, D, T)
    assert codes.shape == (B, G, T, n_codebooks)

    # exact plumbing check vs. a bf16-matched pure-JAX reference
    zq_m, codes_m, commit_m, cbl_m = _reference_matched(z, params, n_codebooks)
    assert np.array_equal(np.asarray(codes), np.asarray(codes_m))
    assert np.allclose(np.asarray(z_q), np.asarray(zq_m), atol=2e-3, rtol=2e-3)
    assert np.allclose(float(commit_loss), float(commit_m), atol=2e-3, rtol=2e-3)
    assert np.allclose(float(codebook_loss), float(cbl_m), atol=2e-3, rtol=2e-3)

    # semantic check vs. a literal f32 port of the PyTorch math (loose tolerance,
    # since the kernel uses bf16 MXU operands / bf16 codebooks)
    commit_f, cbl_f = _reference_f32(z, params, n_codebooks)
    assert np.allclose(float(commit_loss), float(commit_f), atol=5e-2, rtol=8e-2)
    assert np.allclose(float(codebook_loss), float(cbl_f), atol=5e-2, rtol=8e-2)

    # TODO(synk): training-mode quantizer dropout (random n_active_cb per batch
    # element) is not implemented; this is the eval-mode forward only.
    # TODO(synk): for very large codebooks (Cs >= 4096) add a Cs-chunked running
    # (max, argmax) loop to cap the [tile, Cs] similarity intermediate.
    print("KERNEL_OK")
</pallas_src>

<mosaic_0001>
module attributes {stable_mosaic.version = 11 : i64} {
  func.func @_rvq_list_kernel(%arg0: i32, %arg1: i32, %arg2: i32, %arg3: memref<1x32x32xf32, #tpu.memory_space<vmem>>, %arg4: memref<1x4x32x8xbf16, #tpu.memory_space<vmem>>, %arg5: memref<1x4x1x8xf32, #tpu.memory_space<vmem>>, %arg6: memref<1x4x64x8xbf16, #tpu.memory_space<vmem>>, %arg7: memref<1x4x8x64xbf16, #tpu.memory_space<vmem>>, %arg8: memref<1x4x8x32xbf16, #tpu.memory_space<vmem>>, %arg9: memref<1x4x1x32xf32, #tpu.memory_space<vmem>>, %arg10: memref<1x32x32xf32, #tpu.memory_space<vmem>>, %arg11: memref<1x32x4xi32, #tpu.memory_space<vmem>>, %arg12: memref<1x1x8x128xf32, #tpu.memory_space<vmem>>, %arg13: memref<32x32xf32, #tpu.memory_space<vmem>>) attributes {dimension_semantics = [#tpu.dimension_semantics<parallel>, #tpu.dimension_semantics<parallel>, #tpu.dimension_semantics<arbitrary>], iteration_bounds = array<i64: 2, 1, 4>, scalar_prefetch = 0 : i64, scratch_operands = 1 : i64, tpu.core_type = #tpu.core_type<tc>, window_params = [{transform_indices = @transform_0, window_bounds = array<i64: 1, 32, 32>}, {transform_indices = @transform_1, window_bounds = array<i64: 1, 4, 32, 8>}, {transform_indices = @transform_2, window_bounds = array<i64: 1, 4, 1, 8>}, {transform_indices = @transform_3, window_bounds = array<i64: 1, 4, 64, 8>}, {transform_indices = @transform_4, window_bounds = array<i64: 1, 4, 8, 64>}, {transform_indices = @transform_5, window_bounds = array<i64: 1, 4, 8, 32>}, {transform_indices = @transform_6, window_bounds = array<i64: 1, 4, 1, 32>}, {transform_indices = @transform_7, window_bounds = array<i64: 1, 32, 32>}, {transform_indices = @transform_8, window_bounds = array<i64: 1, 32, 4>}, {transform_indices = @transform_9, window_bounds = array<i64: 1, 1, 8, 128>}]} {
    %c0_i32 = arith.constant 0 : i32
    %0 = arith.cmpi eq, %arg2, %c0_i32 : i32
    %1 = arith.extui %0 : i1 to i32
    %c0_i32_0 = arith.constant 0 : i32
    %2 = arith.cmpi ne, %1, %c0_i32_0 : i32
    scf.if %2 {
      %c0_50 = arith.constant 0 : index
      %c0_51 = arith.constant 0 : index
      %c0_52 = arith.constant 0 : index
      %85 = vector.load %arg3[%c0_50, %c0_51, %c0_52] : memref<1x32x32xf32, #tpu.memory_space<vmem>>, vector<1x32x32xf32>
      %86 = vector.shape_cast %85 : vector<1x32x32xf32> to vector<32x32xf32>
      %c0_53 = arith.constant 0 : index
      %c0_54 = arith.constant 0 : index
      %87 = vector.load %arg13[%c0_53, %c0_54] : memref<32x32xf32, #tpu.memory_space<vmem>>, vector<32x32xf32>
      tpu.vector_store %arg13[%c0_53, %c0_54], %86 {strides = array<i32>} : memref<32x32xf32, #tpu.memory_space<vmem>>, vector<32x32xf32>,
      %cst_55 = arith.constant 0.000000e+00 : f32
      %88 = vector.broadcast %cst_55 : f32 to vector<32x32xf32>
      %c0_56 = arith.constant 0 : index
      %c0_57 = arith.constant 0 : index
      %c0_58 = arith.constant 0 : index
      %89 = vector.load %arg10[%c0_56, %c0_57, %c0_58] : memref<1x32x32xf32, #tpu.memory_space<vmem>>, vector<1x32x32xf32>
      %90 = vector.shape_cast %89 : vector<1x32x32xf32> to vector<32x32xf32>
      %91 = vector.shape_cast %88 : vector<32x32xf32> to vector<1x32x32xf32>
      tpu.vector_store %arg10[%c0_56, %c0_57, %c0_58], %91 {strides = array<i32>} : memref<1x32x32xf32, #tpu.memory_space<vmem>>, vector<1x32x32xf32>,
      %c0_i32_59 = arith.constant 0 : i32
      %92 = vector.broadcast %c0_i32_59 : i32 to vector<32x4xi32>
      %c0_60 = arith.constant 0 : index
      %c0_61 = arith.constant 0 : index
      %c0_62 = arith.constant 0 : index
      %93 = vector.load %arg11[%c0_60, %c0_61, %c0_62] : memref<1x32x4xi32, #tpu.memory_space<vmem>>, vector<1x32x4xi32>
      %94 = vector.shape_cast %93 : vector<1x32x4xi32> to vector<32x4xi32>
      %95 = vector.shape_cast %92 : vector<32x4xi32> to vector<1x32x4xi32>
      tpu.vector_store %arg11[%c0_60, %c0_61, %c0_62], %95 {strides = array<i32>} : memref<1x32x4xi32, #tpu.memory_space<vmem>>, vector<1x32x4xi32>,
      %cst_63 = arith.constant 0.000000e+00 : f32
      %96 = vector.broadcast %cst_63 : f32 to vector<8x128xf32>
      %c0_64 = arith.constant 0 : index
      %c0_65 = arith.constant 0 : index
      %c0_66 = arith.constant 0 : index
      %c0_67 = arith.constant 0 : index
      %97 = vector.load %arg12[%c0_64, %c0_65, %c0_66, %c0_67] : memref<1x1x8x128xf32, #tpu.memory_space<vmem>>, vector<1x1x8x128xf32>
      %98 = vector.shape_cast %97 : vector<1x1x8x128xf32> to vector<8x128xf32>
      %99 = vector.shape_cast %96 : vector<8x128xf32> to vector<1x1x8x128xf32>
      tpu.vector_store %arg12[%c0_64, %c0_65, %c0_66, %c0_67], %99 {strides = array<i32>} : memref<1x1x8x128xf32, #tpu.memory_space<vmem>>, vector<1x1x8x128xf32>,
    } else {
    }
    %c0 = arith.constant 0 : index
    %c0_1 = arith.constant 0 : index
    %3 = vector.load %arg13[%c0, %c0_1] : memref<32x32xf32, #tpu.memory_space<vmem>>, vector<32x32xf32>
    %4 = arith.truncf %3 : vector<32x32xf32> to vector<32x32xbf16>
    %c0_2 = arith.constant 0 : index
    %5 = arith.index_cast %arg2 : i32 to index
    %c0_3 = arith.constant 0 : index
    %c0_4 = arith.constant 0 : index
    %6 = vector.load %arg4[%c0_2, %5, %c0_3, %c0_4] : memref<1x4x32x8xbf16, #tpu.memory_space<vmem>>, vector<1x1x32x8xbf16>
    %7 = vector.shape_cast %6 : vector<1x1x32x8xbf16> to vector<32x8xbf16>
    %cst = arith.constant dense<0.000000e+00> : vector<32x8xf32>
    %8 = tpu.matmul %4, %7, %cst {dimension_numbers = #tpu.dot_dimension_numbers<[1], [0], [0], [1], [0, 0, 1, 1], [], []>} : vector<32x32xbf16>, vector<32x8xbf16>, vector<32x8xf32> -> vector<32x8xf32>
    %c0_5 = arith.constant 0 : index
    %9 = arith.index_cast %arg2 : i32 to index
    %c0_6 = arith.constant 0 : index
    %c0_7 = arith.constant 0 : index
    %10 = vector.load %arg5[%c0_5, %9, %c0_6, %c0_7] : memref<1x4x1x8xf32, #tpu.memory_space<vmem>>, vector<1x1x1x8xf32>
    %11 = vector.shape_cast %10 : vector<1x1x1x8xf32> to vector<1x8xf32>
    %12 = vector.broadcast %11 : vector<1x8xf32> to vector<32x8xf32>
    %13 = arith.addf %8, %12 : vector<32x8xf32>
    %14 = arith.truncf %13 : vector<32x8xf32> to vector<32x8xbf16>
    %c0_8 = arith.constant 0 : index
    %15 = arith.index_cast %arg2 : i32 to index
    %c0_9 = arith.constant 0 : index
    %c0_10 = arith.constant 0 : index
    %16 = vector.load %arg7[%c0_8, %15, %c0_9, %c0_10] : memref<1x4x8x64xbf16, #tpu.memory_space<vmem>>, vector<1x1x8x64xbf16>
    %17 = vector.shape_cast %16 : vector<1x1x8x64xbf16> to vector<8x64xbf16>
    %cst_11 = arith.constant dense<0.000000e+00> : vector<32x64xf32>
    %18 = tpu.matmul %14, %17, %cst_11 {dimension_numbers = #tpu.dot_dimension_numbers<[1], [0], [0], [1], [0, 0, 1, 1], [], []>} : vector<32x8xbf16>, vector<8x64xbf16>, vector<32x64xf32> -> vector<32x64xf32>
    %19 = tpu.iota {dimensions = array<i32: 1>} : vector<32x64xi32>
    %cst_12 = arith.constant dense<0xFF800000> : vector<32xf32>
    %20 = vector.multi_reduction <maximumf>, %18, %cst_12 [1] : vector<32x64xf32> to vector<32xf32>
    %21 = vector.shape_cast %20 : vector<32xf32> to vector<32x1xf32>
    %22 = vector.broadcast %21 : vector<32x1xf32> to vector<32x64xf32>
    %23 = arith.cmpf oeq, %18, %22 : vector<32x64xf32>
    %c64_i32 = arith.constant 64 : i32
    %24 = vector.broadcast %c64_i32 : i32 to vector<32x64xi32>
    %25 = arith.select %23, %19, %24 : vector<32x64xi1>, vector<32x64xi32>
    %cst_13 = arith.constant dense<2147483647> : vector<32xi32>
    %26 = vector.multi_reduction <minsi>, %25, %cst_13 [1] : vector<32x64xi32> to vector<32xi32>
    %27 = vector.shape_cast %26 : vector<32xi32> to vector<32x1xi32>
    %28 = vector.broadcast %27 : vector<32x1xi32> to vector<32x64xi32>
    %29 = arith.cmpi eq, %19, %28 : vector<32x64xi32>
    %30 = arith.extui %29 : vector<32x64xi1> to vector<32x64xi32>
    %31 = arith.sitofp %30 : vector<32x64xi32> to vector<32x64xf32>
    %32 = arith.truncf %31 : vector<32x64xf32> to vector<32x64xbf16>
    %c0_14 = arith.constant 0 : index
    %33 = arith.index_cast %arg2 : i32 to index
    %c0_15 = arith.constant 0 : index
    %c0_16 = arith.constant 0 : index
    %34 = vector.load %arg6[%c0_14, %33, %c0_15, %c0_16] : memref<1x4x64x8xbf16, #tpu.memory_space<vmem>>, vector<1x1x64x8xbf16>
    %35 = vector.shape_cast %34 : vector<1x1x64x8xbf16> to vector<64x8xbf16>
    %cst_17 = arith.constant dense<0.000000e+00> : vector<32x8xf32>
    %36 = tpu.matmul %32, %35, %cst_17 {dimension_numbers = #tpu.dot_dimension_numbers<[1], [0], [0], [1], [0, 0, 1, 1], [], []>} : vector<32x64xbf16>, vector<64x8xbf16>, vector<32x8xf32> -> vector<32x8xf32>
    %37 = arith.subf %13, %36 : vector<32x8xf32>
    %38 = arith.mulf %37, %37 : vector<32x8xf32>
    %cst_18 = arith.constant dense<0.000000e+00> : vector<32xf32>
    %39 = vector.multi_reduction <add>, %38, %cst_18 [1] : vector<32x8xf32> to vector<32xf32>
    %40 = vector.shape_cast %39 : vector<32xf32> to vector<32x1xf32>
    %cst_19 = arith.constant dense<0.000000e+00> : vector<1xf32>
    %41 = vector.multi_reduction <add>, %40, %cst_19 [0] : vector<32x1xf32> to vector<1xf32>
    %42 = vector.shape_cast %41 : vector<1xf32> to vector<1x1xf32>
    %43 = arith.truncf %36 : vector<32x8xf32> to vector<32x8xbf16>
    %c0_20 = arith.constant 0 : index
    %44 = arith.index_cast %arg2 : i32 to index
    %c0_21 = arith.constant 0 : index
    %c0_22 = arith.constant 0 : index
    %45 = vector.load %arg8[%c0_20, %44, %c0_21, %c0_22] : memref<1x4x8x32xbf16, #tpu.memory_space<vmem>>, vector<1x1x8x32xbf16>
    %46 = vector.shape_cast %45 : vector<1x1x8x32xbf16> to vector<8x32xbf16>
    %cst_23 = arith.constant dense<0.000000e+00> : vector<32x32xf32>
    %47 = tpu.matmul %43, %46, %cst_23 {dimension_numbers = #tpu.dot_dimension_numbers<[1], [0], [0], [1], [0, 0, 1, 1], [], []>} : vector<32x8xbf16>, vector<8x32xbf16>, vector<32x32xf32> -> vector<32x32xf32>
    %c0_24 = arith.constant 0 : index
    %48 = arith.index_cast %arg2 : i32 to index
    %c0_25 = arith.constant 0 : index
    %c0_26 = arith.constant 0 : index
    %49 = vector.load %arg9[%c0_24, %48, %c0_25, %c0_26] : memref<1x4x1x32xf32, #tpu.memory_space<vmem>>, vector<1x1x1x32xf32>
    %50 = vector.shape_cast %49 : vector<1x1x1x32xf32> to vector<1x32xf32>
    %51 = vector.broadcast %50 : vector<1x32xf32> to vector<32x32xf32>
    %52 = arith.addf %47, %51 : vector<32x32xf32>
    %53 = tpu.iota {dimensions = array<i32: 1>} : vector<32x4xi32>
    %54 = vector.broadcast %arg2 : i32 to vector<32x4xi32>
    %55 = arith.cmpi eq, %53, %54 : vector<32x4xi32>
    %c0_27 = arith.constant 0 : index
    %c0_28 = arith.constant 0 : index
    %c0_29 = arith.constant 0 : index
    %56 = vector.load %arg11[%c0_27, %c0_28, %c0_29] : memref<1x32x4xi32, #tpu.memory_space<vmem>>, vector<1x32x4xi32>
    %57 = vector.shape_cast %56 : vector<1x32x4xi32> to vector<32x4xi32>
    %58 = vector.shape_cast %27 : vector<32x1xi32> to vector<32x1xi32>
    %59 = vector.broadcast %58 : vector<32x1xi32> to vector<32x4xi32>
    %60 = arith.select %55, %59, %57 : vector<32x4xi1>, vector<32x4xi32>
    %c0_30 = arith.constant 0 : index
    %c0_31 = arith.constant 0 : index
    %c0_32 = arith.constant 0 : index
    %61 = vector.load %arg11[%c0_30, %c0_31, %c0_32] : memref<1x32x4xi32, #tpu.memory_space<vmem>>, vector<1x32x4xi32>
    %62 = vector.shape_cast %61 : vector<1x32x4xi32> to vector<32x4xi32>
    %63 = vector.shape_cast %60 : vector<32x4xi32> to vector<1x32x4xi32>
    tpu.vector_store %arg11[%c0_30, %c0_31, %c0_32], %63 {strides = array<i32>} : memref<1x32x4xi32, #tpu.memory_space<vmem>>, vector<1x32x4xi32>,
    %64 = tpu.iota {dimensions = array<i32: 1>} : vector<8x128xi32>
    %c0_33 = arith.constant 0 : index
    %c0_34 = arith.constant 0 : index
    %c0_35 = arith.constant 0 : index
    %c0_36 = arith.constant 0 : index
    %65 = vector.load %arg12[%c0_33, %c0_34, %c0_35, %c0_36] : memref<1x1x8x128xf32, #tpu.memory_space<vmem>>, vector<1x1x8x128xf32>
    %66 = vector.shape_cast %65 : vector<1x1x8x128xf32> to vector<8x128xf32>
    %67 = vector.broadcast %arg2 : i32 to vector<8x128xi32>
    %68 = arith.cmpi eq, %64, %67 : vector<8x128xi32>
    %cst_37 = arith.constant 0.000000e+00 : f32
    %69 = vector.shape_cast %42 : vector<1x1xf32> to vector<1x1xf32>
    %70 = vector.broadcast %69 : vector<1x1xf32> to vector<8x128xf32>
    %71 = vector.broadcast %cst_37 : f32 to vector<8x128xf32>
    %72 = arith.select %68, %70, %71 : vector<8x128xi1>, vector<8x128xf32>
    %73 = arith.addf %66, %72 : vector<8x128xf32>
    %c0_38 = arith.constant 0 : index
    %c0_39 = arith.constant 0 : index
    %c0_40 = arith.constant 0 : index
    %c0_41 = arith.constant 0 : index
    %74 = vector.load %arg12[%c0_38, %c0_39, %c0_40, %c0_41] : memref<1x1x8x128xf32, #tpu.memory_space<vmem>>, vector<1x1x8x128xf32>
    %75 = vector.shape_cast %74 : vector<1x1x8x128xf32> to vector<8x128xf32>
    %76 = vector.shape_cast %73 : vector<8x128xf32> to vector<1x1x8x128xf32>
    tpu.vector_store %arg12[%c0_38, %c0_39, %c0_40, %c0_41], %76 {strides = array<i32>} : memref<1x1x8x128xf32, #tpu.memory_space<vmem>>, vector<1x1x8x128xf32>,
    %c0_42 = arith.constant 0 : index
    %c0_43 = arith.constant 0 : index
    %c0_44 = arith.constant 0 : index
    %77 = vector.load %arg10[%c0_42, %c0_43, %c0_44] : memref<1x32x32xf32, #tpu.memory_space<vmem>>, vector<1x32x32xf32>
    %78 = vector.shape_cast %77 : vector<1x32x32xf32> to vector<32x32xf32>
    %79 = arith.addf %78, %52 : vector<32x32xf32>
    %c0_45 = arith.constant 0 : index
    %c0_46 = arith.constant 0 : index
    %c0_47 = arith.constant 0 : index
    %80 = vector.load %arg10[%c0_45, %c0_46, %c0_47] : memref<1x32x32xf32, #tpu.memory_space<vmem>>, vector<1x32x32xf32>
    %81 = vector.shape_cast %80 : vector<1x32x32xf32> to vector<32x32xf32>
    %82 = vector.shape_cast %79 : vector<32x32xf32> to vector<1x32x32xf32>
    tpu.vector_store %arg10[%c0_45, %c0_46, %c0_47], %82 {strides = array<i32>} : memref<1x32x32xf32, #tpu.memory_space<vmem>>, vector<1x32x32xf32>,
    %83 = arith.subf %3, %52 : vector<32x32xf32>
    %c0_48 = arith.constant 0 : index
    %c0_49 = arith.constant 0 : index
    %84 = vector.load %arg13[%c0_48, %c0_49] : memref<32x32xf32, #tpu.memory_space<vmem>>, vector<32x32xf32>
    tpu.vector_store %arg13[%c0_48, %c0_49], %83 {strides = array<i32>} : memref<32x32xf32, #tpu.memory_space<vmem>>, vector<32x32xf32>,
    return
  }
  func.func @transform_0(%arg0: i32, %arg1: i32, %arg2: i32) -> (i32, i32, i32) {
    %c0_i32 = arith.constant 0 : i32
    %c0_i32_0 = arith.constant 0 : i32
    return %arg0, %arg1, %c0_i32 : i32, i32, i32
  }
  func.func @transform_1(%arg0: i32, %arg1: i32, %arg2: i32) -> (i32, i32, i32, i32) {
    %c0_i32 = arith.constant 0 : i32
    %c0_i32_0 = arith.constant 0 : i32
    %c0_i32_1 = arith.constant 0 : i32
    %c0_i32_2 = arith.constant 0 : i32
    return %arg0, %c0_i32, %c0_i32_0, %c0_i32_1 : i32, i32, i32, i32
  }
  func.func @transform_2(%arg0: i32, %arg1: i32, %arg2: i32) -> (i32, i32, i32, i32) {
    %c0_i32 = arith.constant 0 : i32
    %c0_i32_0 = arith.constant 0 : i32
    %c0_i32_1 = arith.constant 0 : i32
    %c0_i32_2 = arith.constant 0 : i32
    return %arg0, %c0_i32, %c0_i32_0, %c0_i32_1 : i32, i32, i32, i32
  }
  func.func @transform_3(%arg0: i32, %arg1: i32, %arg2: i32) -> (i32, i32, i32, i32) {
    %c0_i32 = arith.constant 0 : i32
    %c0_i32_0 = arith.constant 0 : i32
    %c0_i32_1 = arith.constant 0 : i32
    %c0_i32_2 = arith.constant 0 : i32
    return %arg0, %c0_i32, %c0_i32_0, %c0_i32_1 : i32, i32, i32, i32
  }
  func.func @transform_4(%arg0: i32, %arg1: i32, %arg2: i32) -> (i32, i32, i32, i32) {
    %c0_i32 = arith.constant 0 : i32
    %c0_i32_0 = arith.constant 0 : i32
    %c0_i32_1 = arith.constant 0 : i32
    %c0_i32_2 = arith.constant 0 : i32
    return %arg0, %c0_i32, %c0_i32_0, %c0_i32_1 : i32, i32, i32, i32
  }
  func.func @transform_5(%arg0: i32, %arg1: i32, %arg2: i32) -> (i32, i32, i32, i32) {
    %c0_i32 = arith.constant 0 : i32
    %c0_i32_0 = arith.constant 0 : i32
    %c0_i32_1 = arith.constant 0 : i32
    %c0_i32_2 = arith.constant 0 : i32
    return %arg0, %c0_i32, %c0_i32_0, %c0_i32_1 : i32, i32, i32, i32
  }
  func.func @transform_6(%arg0: i32, %arg1: i32, %arg2: i32) -> (i32, i32, i32, i32) {
    %c0_i32 = arith.constant 0 : i32
    %c0_i32_0 = arith.constant 0 : i32
    %c0_i32_1 = arith.constant 0 : i32
    %c0_i32_2 = arith.constant 0 : i32
    return %arg0, %c0_i32, %c0_i32_0, %c0_i32_1 : i32, i32, i32, i32
  }
  func.func @transform_7(%arg0: i32, %arg1: i32, %arg2: i32) -> (i32, i32, i32) {
    %c0_i32 = arith.constant 0 : i32
    %c0_i32_0 = arith.constant 0 : i32
    return %arg0, %arg1, %c0_i32 : i32, i32, i32
  }
  func.func @transform_8(%arg0: i32, %arg1: i32, %arg2: i32) -> (i32, i32, i32) {
    %c0_i32 = arith.constant 0 : i32
    %c0_i32_0 = arith.constant 0 : i32
    return %arg0, %arg1, %c0_i32 : i32, i32, i32
  }
  func.func @transform_9(%arg0: i32, %arg1: i32, %arg2: i32) -> (i32, i32, i32, i32) {
    %c0_i32 = arith.constant 0 : i32
    %c0_i32_0 = arith.constant 0 : i32
    %c0_i32_1 = arith.constant 0 : i32
    return %arg0, %arg1, %c0_i32, %c0_i32_0 : i32, i32, i32, i32
  }
}

</mosaic_0001>

<llo_original>
// kernel: tpu_custom_call.1
$region0: #{tpu_custom_call.1}
  #allocation0 [shape = 'u32[]', space=smem, size = 0x4, offset = 0x4, fixed_abs, tag = 'smem constant byte address 0x4 - core index']
  #allocation1 [shape = 'u32[144,128]{1,0:T(1,128)}', space=vmem, size = 0x12000, scoped, tag = 'internal scratch']
  #allocation2 [shape = 'f32[32,32]{1,0:T(8,128)}', space=vmem, size = 0x4000, scoped, tag = 'scratch operand']
  %s0 = inlined_call_operand.vmem [shape: f32[2,32,32], index: 0, kind: input, shape index: {}]
  %s1 = inlined_call_operand.vmem [shape: bf16[2,4,32,8], index: 1, kind: input, shape index: {}]
  %s2 = inlined_call_operand.vmem [shape: f32[2,4,1,8], index: 2, kind: input, shape index: {}]
  %s3 = inlined_call_operand.vmem [shape: bf16[2,4,64,8], index: 3, kind: input, shape index: {}]
  %s4 = inlined_call_operand.vmem [shape: bf16[2,4,8,64], index: 4, kind: input, shape index: {}]
  %s5 = inlined_call_operand.vmem [shape: bf16[2,4,8,32], index: 5, kind: input, shape index: {}]
  %s6 = inlined_call_operand.vmem [shape: f32[2,4,1,32], index: 6, kind: input, shape index: {}]
  %s7 = inlined_call_operand.hbm [shape: f32[2,32,32], index: 7, kind: output, shape index: {0}]
  %s8 = inlined_call_operand.vmem [shape: s32[2,32,4], index: 8, kind: output, shape index: {1}]
  %s9 = inlined_call_operand.hbm [shape: f32[2,1,8,128], index: 9, kind: output, shape index: {2}]
  %10 = xla_tuple %s7, %s8, %s9
  %s11 = sld [smem:[#allocation0]]
  $region81: #{tpu_custom_call.1} parent=0
    _
  %s13 = ssub.s32 1, %s11
  %s14 = scalar_select 0, %s13, %s11
  $region1: #{tpu_custom_call.1} parent=0
    #allocation3 [shape = 'u8[32768]{0}', space=vmem, size = 0x8000, scoped, tag = 'output window, operand 0']
    #allocation4 [shape = 's32[2]{0}', space=sflag, size = 0x8, scoped, tag = 'scoped memory for tpu_custom_call.1']
    #allocation5 [shape = 'u8[8192]{0}', space=vmem, size = 0x2000, scoped, tag = 'output window, operand 2']
    #allocation6 [shape = 's32[2]{0}', space=sflag, size = 0x8, scoped, tag = 'scoped memory for tpu_custom_call.1']
    %15 = vsyncpa [#allocation4], 0
    %s16 = scalar_lea.sflag [#allocation4], 1
    %17 = vsyncpa %s16, 0
    %18 = vsyncpa [#allocation6], 0
    %s19 = scalar_lea.sflag [#allocation6], 1
    %20 = vsyncpa %s19, 0
    loop: start=0, step=1, limit=10
    $region2: #{tpu_custom_call.1} parent=1 // loop_pre_header
      _
    $region3: #{tpu_custom_call.1} parent=1 // loop_header
      %s22 = sphi 0, %s26
      %p23 = scmp.ge.s32.totalorder %s22, 10
      %s29 = sphi 0, %s48
      %s30 = sphi 0, %s44
      %s31 = sphi 0, %s40
      %s32 = sphi 0, %s29
      %s33 = sphi 0, %s30
      %s34 = sphi 0, %s31
      %s35 = sphi 0, %s32
      %s36 = sphi 0, %s33
      %s37 = sphi 0, %s34
      %s53 = sphi 0, %s55
      %s56 = sphi 0, %s53
      %s57 = sphi 0, %s56
      %s73 = sphi 0, %s57
      %s79 = sphi 0, %s81
      %s82 = sphi 0, %s79
      %s83 = sphi 0, %s82
      %s99 = sphi 0, %s83
      %s105 = sphi 0, %s107
      %s108 = sphi 0, %s105
      %s109 = sphi 0, %s108
      %s125 = sphi 0, %s109
      %s131 = sphi 0, %s133
      %s134 = sphi 0, %s131
      %s135 = sphi 0, %s134
      %s151 = sphi 0, %s135
      %s157 = sphi 0, %s159
      %s160 = sphi 0, %s157
      %s161 = sphi 0, %s160
      %s177 = sphi 0, %s161
      %s183 = sphi 0, %s185
      %s186 = sphi 0, %s183
      %s187 = sphi 0, %s186
      %s203 = sphi 0, %s187
      %s209 = sphi 0, %s211
      %s212 = sphi 0, %s209
      %s213 = sphi 0, %s212
      %s229 = sphi 0, %s213
      %s237 = sphi 0, %s239
      %s240 = sphi 0, %s237
      %s241 = sphi 0, %s240
      %s257 = sphi 0, %s241
      %s265 = sphi 0, %s267
      %s268 = sphi 0, %s265
      %s269 = sphi 0, %s268
      %s285 = sphi 0, %s269
      %s293 = sphi 0, %s295
      %s296 = sphi 0, %s293
      %s297 = sphi 0, %s296
      %s313 = sphi 0, %s297
    $region4: #{tpu_custom_call.1} parent=1 // loop_header_branch
      %25 = sbr.rel (%p23) target = $region8
    $region5: #{tpu_custom_call.1} parent=1 // loop_body
      %s27 = ssub.s32 %s22, 1
      %s28 = ssub.s32 %s22, 2
      %s38 = sadd.s32 1, %s31
      %p39 = scmp.ge.s32.totalorder %s38, 4
      %s40 = scalar_select %p39, 0, %s38
      %s41 = sadd.s32 1, %s30
      %s42 = scalar_select %p39, %s41, %s30
      %p43 = scmp.ge.s32.totalorder %s42, 1
      %s44 = scalar_select %p43, 0, %s42
      %s45 = sadd.s32 1, %s29
      %s46 = scalar_select %p43, %s45, %s29
      %p47 = scmp.ge.s32.totalorder %s46, 2
      %s48 = scalar_select %p47, 0, %s46
      %s49 = ssub.s32 %s29, %s48
      %s50 = ssub.s32 %s30, %s44
      %s51 = sor.u32 %s49, %s50
      %p52 = scmp.eq.s32.totalorder %s51, 0
      %s54 = sadd.s32 %s53, 1
      %s55 = scalar_select %p52, %s53, %s54
      %p58 = pneg %p52
      %p59 = scmp.eq.s32.totalorder %s22, 7
      %p60 = por %p58, %p59
      %p61 = scmp.ne.s32.totalorder %s53, %s56
      %p62 = scmp.eq.s32.totalorder %s22, 0
      %p63 = por %p61, %p62
      %p64 = scmp.ne.s32.totalorder %s53, %s56
      %p65 = scmp.eq.s32.totalorder %s27, 7
      %p66 = por %p64, %p65
      %p67 = scmp.ne.s32.totalorder %s56, %s57
      %p68 = scmp.eq.s32.totalorder %s27, 0
      %p69 = por %p67, %p68
      %p70 = scmp.ne.s32.totalorder %s56, %s57
      %p71 = scmp.eq.s32.totalorder %s28, 7
      %p72 = por %p70, %p71
      %p74 = scmp.ne.s32.totalorder %s57, %s73
      %p75 = scmp.eq.s32.totalorder %s28, 0
      %p76 = por %p74, %p75
      %s77 = ssub.s32 %s29, %s48
      %p78 = scmp.eq.s32.totalorder %s77, 0
      %s80 = sadd.s32 %s79, 1
      %s81 = scalar_select %p78, %s79, %s80
      %p84 = pneg %p78
      %p85 = scmp.eq.s32.totalorder %s22, 7
      %p86 = por %p84, %p85
      %p87 = scmp.ne.s32.totalorder %s79, %s82
      %p88 = scmp.eq.s32.totalorder %s22, 0
      %p89 = por %p87, %p88
      %p90 = scmp.ne.s32.totalorder %s79, %s82
      %p91 = scmp.eq.s32.totalorder %s27, 7
      %p92 = por %p90, %p91
      %p93 = scmp.ne.s32.totalorder %s82, %s83
      %p94 = scmp.eq.s32.totalorder %s27, 0
      %p95 = por %p93, %p94
      %p96 = scmp.ne.s32.totalorder %s82, %s83
      %p97 = scmp.eq.s32.totalorder %s28, 7
      %p98 = por %p96, %p97
      %p100 = scmp.ne.s32.totalorder %s83, %s99
      %p101 = scmp.eq.s32.totalorder %s28, 0
      %p102 = por %p100, %p101
      %s103 = ssub.s32 %s29, %s48
      %p104 = scmp.eq.s32.totalorder %s103, 0
      %s106 = sadd.s32 %s105, 1
      %s107 = scalar_select %p104, %s105, %s106
      %p110 = pneg %p104
      %p111 = scmp.eq.s32.totalorder %s22, 7
      %p112 = por %p110, %p111
      %p113 = scmp.ne.s32.totalorder %s105, %s108
      %p114 = scmp.eq.s32.totalorder %s22, 0
      %p115 = por %p113, %p114
      %p116 = scmp.ne.s32.totalorder %s105, %s108
      %p117 = scmp.eq.s32.totalorder %s27, 7
      %p118 = por %p116, %p117
      %p119 = scmp.ne.s32.totalorder %s108, %s109
      %p120 = scmp.eq.s32.totalorder %s27, 0
      %p121 = por %p119, %p120
      %p122 = scmp.ne.s32.totalorder %s108, %s109
      %p123 = scmp.eq.s32.totalorder %s28, 7
      %p124 = por %p122, %p123
      %p126 = scmp.ne.s32.totalorder %s109, %s125
      %p127 = scmp.eq.s32.totalorder %s28, 0
      %p128 = por %p126, %p127
      %s129 = ssub.s32 %s29, %s48
      %p130 = scmp.eq.s32.totalorder %s129, 0
      %s132 = sadd.s32 %s131, 1
      %s133 = scalar_select %p130, %s131, %s132
      %p136 = pneg %p130
      %p137 = scmp.eq.s32.totalorder %s22, 7
      %p138 = por %p136, %p137
      %p139 = scmp.ne.s32.totalorder %s131, %s134
      %p140 = scmp.eq.s32.totalorder %s22, 0
      %p141 = por %p139, %p140
      %p142 = scmp.ne.s32.totalorder %s131, %s134
      %p143 = scmp.eq.s32.totalorder %s27, 7
      %p144 = por %p142, %p143
      %p145 = scmp.ne.s32.totalorder %s134, %s135
      %p146 = scmp.eq.s32.totalorder %s27, 0
      %p147 = por %p145, %p146
      %p148 = scmp.ne.s32.totalorder %s134, %s135
      %p149 = scmp.eq.s32.totalorder %s28, 7
      %p150 = por %p148, %p149
      %p152 = scmp.ne.s32.totalorder %s135, %s151
      %p153 = scmp.eq.s32.totalorder %s28, 0
      %p154 = por %p152, %p153
      %s155 = ssub.s32 %s29, %s48
      %p156 = scmp.eq.s32.totalorder %s155, 0
      %s158 = sadd.s32 %s157, 1
      %s159 = scalar_select %p156, %s157, %s158
      %p162 = pneg %p156
      %p163 = scmp.eq.s32.totalorder %s22, 7
      %p164 = por %p162, %p163
      %p165 = scmp.ne.s32.totalorder %s157, %s160
      %p166 = scmp.eq.s32.totalorder %s22, 0
      %p167 = por %p165, %p166
      %p168 = scmp.ne.s32.totalorder %s157, %s160
      %p169 = scmp.eq.s32.totalorder %s27, 7
      %p170 = por %p168, %p169
      %p171 = scmp.ne.s32.totalorder %s160, %s161
      %p172 = scmp.eq.s32.totalorder %s27, 0
      %p173 = por %p171, %p172
      %p174 = scmp.ne.s32.totalorder %s160, %s161
      %p175 = scmp.eq.s32.totalorder %s28, 7
      %p176 = por %p174, %p175
      %p178 = scmp.ne.s32.totalorder %s161, %s177
      %p179 = scmp.eq.s32.totalorder %s28, 0
      %p180 = por %p178, %p179
      %s181 = ssub.s32 %s29, %s48
      %p182 = scmp.eq.s32.totalorder %s181, 0
      %s184 = sadd.s32 %s183, 1
      %s185 = scalar_select %p182, %s183, %s184
      %p188 = pneg %p182
      %p189 = scmp.eq.s32.totalorder %s22, 7
      %p190 = por %p188, %p189
      %p191 = scmp.ne.s32.totalorder %s183, %s186
      %p192 = scmp.eq.s32.totalorder %s22, 0
      %p193 = por %p191, %p192
      %p194 = scmp.ne.s32.totalorder %s183, %s186
      %p195 = scmp.eq.s32.totalorder %s27, 7
      %p196 = por %p194, %p195
      %p197 = scmp.ne.s32.totalorder %s186, %s187
      %p198 = scmp.eq.s32.totalorder %s27, 0
      %p199 = por %p197, %p198
      %p200 = scmp.ne.s32.totalorder %s186, %s187
      %p201 = scmp.eq.s32.totalorder %s28, 7
      %p202 = por %p200, %p201
      %p204 = scmp.ne.s32.totalorder %s187, %s203
      %p205 = scmp.eq.s32.totalorder %s28, 0
      %p206 = por %p204, %p205
      %s207 = ssub.s32 %s29, %s48
      %p208 = scmp.eq.s32.totalorder %s207, 0
      %s210 = sadd.s32 %s209, 1
      %s211 = scalar_select %p208, %s209, %s210
      %p214 = pneg %p208
      %p215 = scmp.eq.s32.totalorder %s22, 7
      %p216 = por %p214, %p215
      %p217 = scmp.ne.s32.totalorder %s209, %s212
      %p218 = scmp.eq.s32.totalorder %s22, 0
      %p219 = por %p217, %p218
      %p220 = scmp.ne.s32.totalorder %s209, %s212
      %p221 = scmp.eq.s32.totalorder %s27, 7
      %p222 = por %p220, %p221
      %p223 = scmp.ne.s32.totalorder %s212, %s213
      %p224 = scmp.eq.s32.totalorder %s27, 0
      %p225 = por %p223, %p224
      %p226 = scmp.ne.s32.totalorder %s212, %s213
      %p227 = scmp.eq.s32.totalorder %s28, 7
      %p228 = por %p226, %p227
      %p230 = scmp.ne.s32.totalorder %s213, %s229
      %p231 = scmp.eq.s32.totalorder %s28, 0
      %p232 = por %p230, %p231
      %s233 = ssub.s32 %s29, %s48
      %s234 = ssub.s32 %s30, %s44
      %s235 = sor.u32 %s233, %s234
      %p236 = scmp.eq.s32.totalorder %s235, 0
      %s238 = sadd.s32 %s237, 1
      %s239 = scalar_select %p236, %s237, %s238
      %p242 = pneg %p236
      %p243 = scmp.eq.s32.totalorder %s22, 7
      %p244 = por %p242, %p243
      %p245 = scmp.ne.s32.totalorder %s237, %s240
      %p246 = scmp.eq.s32.totalorder %s22, 0
      %p247 = por %p245, %p246
      %p248 = scmp.ne.s32.totalorder %s237, %s240
      %p249 = scmp.eq.s32.totalorder %s27, 7
      %p250 = por %p248, %p249
      %p251 = scmp.ne.s32.totalorder %s240, %s241
      %p252 = scmp.eq.s32.totalorder %s27, 0
      %p253 = por %p251, %p252
      %p254 = scmp.ne.s32.totalorder %s240, %s241
      %p255 = scmp.eq.s32.totalorder %s28, 7
      %p256 = por %p254, %p255
      %p258 = scmp.ne.s32.totalorder %s241, %s257
      %p259 = scmp.eq.s32.totalorder %s28, 0
      %p260 = por %p258, %p259
      %s261 = ssub.s32 %s29, %s48
      %s262 = ssub.s32 %s30, %s44
      %s263 = sor.u32 %s261, %s262
      %p264 = scmp.eq.s32.totalorder %s263, 0
      %s266 = sadd.s32 %s265, 1
      %s267 = scalar_select %p264, %s265, %s266
      %p270 = pneg %p264
      %p271 = scmp.eq.s32.totalorder %s22, 7
      %p272 = por %p270, %p271
      %p273 = scmp.ne.s32.totalorder %s265, %s268
      %p274 = scmp.eq.s32.totalorder %s22, 0
      %p275 = por %p273, %p274
      %p276 = scmp.ne.s32.totalorder %s265, %s268
      %p277 = scmp.eq.s32.totalorder %s27, 7
      %p278 = por %p276, %p277
      %p279 = scmp.ne.s32.totalorder %s268, %s269
      %p280 = scmp.eq.s32.totalorder %s27, 0
      %p281 = por %p279, %p280
      %p282 = scmp.ne.s32.totalorder %s268, %s269
      %p283 = scmp.eq.s32.totalorder %s28, 7
      %p284 = por %p282, %p283
      %p286 = scmp.ne.s32.totalorder %s269, %s285
      %p287 = scmp.eq.s32.totalorder %s28, 0
      %p288 = por %p286, %p287
      %s289 = ssub.s32 %s29, %s48
      %s290 = ssub.s32 %s30, %s44
      %s291 = sor.u32 %s289, %s290
      %p292 = scmp.eq.s32.totalorder %s291, 0
      %s294 = sadd.s32 %s293, 1
      %s295 = scalar_select %p292, %s293, %s294
      %p298 = pneg %p292
      %p299 = scmp.eq.s32.totalorder %s22, 7
      %p300 = por %p298, %p299
      %p301 = scmp.ne.s32.totalorder %s293, %s296
      %p302 = scmp.eq.s32.totalorder %s22, 0
      %p303 = por %p301, %p302
      %p304 = scmp.ne.s32.totalorder %s293, %s296
      %p305 = scmp.eq.s32.totalorder %s27, 7
      %p306 = por %p304, %p305
      %p307 = scmp.ne.s32.totalorder %s296, %s297
      %p308 = scmp.eq.s32.totalorder %s27, 0
      %p309 = por %p307, %p308
      %p310 = scmp.ne.s32.totalorder %s296, %s297
      %p311 = scmp.eq.s32.totalorder %s28, 7
      %p312 = por %p310, %p311
      %p314 = scmp.ne.s32.totalorder %s297, %s313
      %p315 = scmp.eq.s32.totalorder %s28, 0
      %p316 = por %p314, %p315
      %p317 = scmp.le.s32.totalorder 1, %s22
      %p318 = scmp.lt.s32.totalorder %s22, 9
      %p319 = pnand %p317, %p318
      %p320 = pneg %p319
      // Predicated region
      $region9: #{tpu_custom_call.1} parent=5 // pred_check
        _
      $region10: #{tpu_custom_call.1} parent=5 // pred_check_branch
        %322 = sbr.rel (%p319) target = $region12
      $region11: #{tpu_custom_call.1} parent=5 // pred_region
        %s323 = ssub.s32 %s22, 1
      $region12: #{tpu_custom_call.1} parent=5 // pred_fallthru
        _
      %p324 = scmp.lt.s32.totalorder %s22, 8
      // Predicated region
      $region13: #{tpu_custom_call.1} parent=5 // pred_check
        %p325 = pneg %p324
      $region14: #{tpu_custom_call.1} parent=5 // pred_check_branch
        %327 = sbr.rel (%p325) target = $region16
      $region15: #{tpu_custom_call.1} parent=5 // pred_region
        // Predicated region
        $region17: #{tpu_custom_call.1} parent=15 // pred_check
          %p328 = pneg %p63
        $region18: #{tpu_custom_call.1} parent=15 // pred_check_branch
          %330 = sbr.rel (%p328) target = $region20
        $region19: #{tpu_custom_call.1} parent=15 // pred_region
          %s331 = smul.u32 4, %s30
          %p332 = scmp.lt.s32.totalorder %s29, 1
          %s333 = scalar_select %p332, %s29, 1
          %p334 = scmp.lt.s32.totalorder %s331, 3
          %s335 = scalar_select %p334, %s331, 3
          %s336 = smul.addr %s333, 4
          %s337 = sadd.s32 %s335, %s336
          %s338 = smul.addr %s337, 8
          %s339 = scalar_lea.vmem %s0, %s338
          %s340 = smul.u32 4, %s30
        $region20: #{tpu_custom_call.1} parent=15 // pred_fallthru
          _
        // Predicated region
        $region21: #{tpu_custom_call.1} parent=15 // pred_check
          %p341 = pneg %p89
        $region22: #{tpu_custom_call.1} parent=15 // pred_check_branch
          %343 = sbr.rel (%p341) target = $region24
        $region23: #{tpu_custom_call.1} parent=15 // pred_region
          %p344 = scmp.lt.s32.totalorder %s29, 1
          %s345 = scalar_select %p344, %s29, 1
          %s346 = smul.addr %s345, 16
          %s347 = smul.addr %s346, 4
          %s348 = scalar_lea.vmem %s1, %s347
        $region24: #{tpu_custom_call.1} parent=15 // pred_fallthru
          _
        // Predicated region
        $region25: #{tpu_custom_call.1} parent=15 // pred_check
          %p349 = pneg %p115
        $region26: #{tpu_custom_call.1} parent=15 // pred_check_branch
          %351 = sbr.rel (%p349) target = $region28
        $region27: #{tpu_custom_call.1} parent=15 // pred_region
          %p352 = scmp.lt.s32.totalorder %s29, 1
          %s353 = scalar_select %p352, %s29, 1
          %s354 = smul.addr %s353, 4
          %s355 = scalar_lea.vmem %s2, %s354
        $region28: #{tpu_custom_call.1} parent=15 // pred_fallthru
          _
        // Predicated region
        $region29: #{tpu_custom_call.1} parent=15 // pred_check
          %p356 = pneg %p141
        $region30: #{tpu_custom_call.1} parent=15 // pred_check_branch
          %358 = sbr.rel (%p356) target = $region32
        $region31: #{tpu_custom_call.1} parent=15 // pred_region
          %p359 = scmp.lt.s32.totalorder %s29, 1
          %s360 = scalar_select %p359, %s29, 1
          %s361 = smul.addr %s360, 32
          %s362 = smul.addr %s361, 4
          %s363 = scalar_lea.vmem %s3, %s362
        $region32: #{tpu_custom_call.1} parent=15 // pred_fallthru
          _
        // Predicated region
        $region33: #{tpu_custom_call.1} parent=15 // pred_check
          %p364 = pneg %p167
        $region34: #{tpu_custom_call.1} parent=15 // pred_check_branch
          %366 = sbr.rel (%p364) target = $region36
        $region35: #{tpu_custom_call.1} parent=15 // pred_region
          %p367 = scmp.lt.s32.totalorder %s29, 1
          %s368 = scalar_select %p367, %s29, 1
          %s369 = smul.addr %s368, 4
          %s370 = smul.addr %s369, 4
          %s371 = scalar_lea.vmem %s4, %s370
        $region36: #{tpu_custom_call.1} parent=15 // pred_fallthru
          _
        // Predicated region
        $region37: #{tpu_custom_call.1} parent=15 // pred_check
          %p372 = pneg %p193
        $region38: #{tpu_custom_call.1} parent=15 // pred_check_branch
          %374 = sbr.rel (%p372) target = $region40
        $region39: #{tpu_custom_call.1} parent=15 // pred_region
          %p375 = scmp.lt.s32.totalorder %s29, 1
          %s376 = scalar_select %p375, %s29, 1
          %s377 = smul.addr %s376, 4
          %s378 = smul.addr %s377, 4
          %s379 = scalar_lea.vmem %s5, %s378
        $region40: #{tpu_custom_call.1} parent=15 // pred_fallthru
          _
        // Predicated region
        $region41: #{tpu_custom_call.1} parent=15 // pred_check
          %p380 = pneg %p219
        $region42: #{tpu_custom_call.1} parent=15 // pred_check_branch
          %382 = sbr.rel (%p380) target = $region44
        $region43: #{tpu_custom_call.1} parent=15 // pred_region
          %p383 = scmp.lt.s32.totalorder %s29, 1
          %s384 = scalar_select %p383, %s29, 1
          %s385 = smul.addr %s384, 4
          %s386 = scalar_lea.vmem %s6, %s385
        $region44: #{tpu_custom_call.1} parent=15 // pred_fallthru
          _
      $region16: #{tpu_custom_call.1} parent=5 // pred_fallthru
        _
      %p387 = scmp.le.s32.totalorder 1, %s22
      %p388 = scmp.lt.s32.totalorder %s22, 9
      %p389 = pnand %p387, %p388
      %p390 = pneg %p389
      // Predicated region
      $region45: #{tpu_custom_call.1} parent=5 // pred_check
        _
      $region46: #{tpu_custom_call.1} parent=5 // pred_check_branch
        %392 = sbr.rel (%p389) target = $region48
      $region47: #{tpu_custom_call.1} parent=5 // pred_region
        %s393 = ssub.s32 %s22, 1
        %s394 = smul.u32 4, %s33
        %p395 = scmp.lt.s32.totalorder %s32, 1
        %s396 = scalar_select %p395, %s32, 1
        %p397 = scmp.lt.s32.totalorder %s394, 3
        %s398 = scalar_select %p397, %s394, 3
        %s399 = smul.addr %s396, 4
        %s400 = sadd.s32 %s398, %s399
        %s401 = smul.addr %s400, 8
        %s402 = scalar_lea.vmem %s0, %s401
        %p403 = pneg %p69
        %p404 = pneg %p66
        %p405 = scmp.lt.s32.totalorder %s32, 1
        %s406 = scalar_select %p405, %s32, 1
        %s407 = smul.addr %s406, 16
        %s408 = smul.addr %s407, 4
        %s409 = scalar_lea.vmem %s1, %s408
        %p410 = pneg %p95
        %p411 = pneg %p92
        %p412 = scmp.lt.s32.totalorder %s32, 1
        %s413 = scalar_select %p412, %s32, 1
        %s414 = smul.addr %s413, 4
        %s415 = scalar_lea.vmem %s2, %s414
        %p416 = pneg %p121
        %p417 = pneg %p118
        %p418 = scmp.lt.s32.totalorder %s32, 1
        %s419 = scalar_select %p418, %s32, 1
        %s420 = smul.addr %s419, 32
        %s421 = smul.addr %s420, 4
        %s422 = scalar_lea.vmem %s3, %s421
        %p423 = pneg %p147
        %p424 = pneg %p144
        %p425 = scmp.lt.s32.totalorder %s32, 1
        %s426 = scalar_select %p425, %s32, 1
        %s427 = smul.addr %s426, 4
        %s428 = smul.addr %s427, 4
        %s429 = scalar_lea.vmem %s4, %s428
        %p430 = pneg %p173
        %p431 = pneg %p170
        %p432 = scmp.lt.s32.totalorder %s32, 1
        %s433 = scalar_select %p432, %s32, 1
        %s434 = smul.addr %s433, 4
        %s435 = smul.addr %s434, 4
        %s436 = scalar_lea.vmem %s5, %s435
        %p437 = pneg %p199
        %p438 = pneg %p196
        %p439 = scmp.lt.s32.totalorder %s32, 1
        %s440 = scalar_select %p439, %s32, 1
        %s441 = smul.addr %s440, 4
        %s442 = scalar_lea.vmem %s6, %s441
        %p443 = pneg %p225
        %p444 = pneg %p222
        %p445 = pneg %p253
        %p446 = pneg %p250
        %s447 = sand.u32 %s240, 1
        %s448 = scalar_lea.sflag [#allocation4], %s447
        %s449 = sand.u32 %s240, 1
        %s450 = smul.addr %s449, 32
        %s451 = scalar_lea.vmem [#allocation3], %s450
        %p452 = pneg %p281
        %p453 = pneg %p278
        %s454 = smul.u32 4, %s33
        %p455 = scmp.lt.s32.totalorder %s32, 1
        %s456 = scalar_select %p455, %s32, 1
        %p457 = scmp.lt.s32.totalorder %s454, 3
        %s458 = scalar_select %p457, %s454, 3
        %s459 = smul.addr %s456, 4
        %s460 = sadd.s32 %s458, %s459
        %s461 = smul.addr %s460, 8
        %s462 = scalar_lea.vmem %s8, %s461
        %p463 = pneg %p309
        %p464 = pneg %p306
        %s465 = sand.u32 %s296, 1
        %s466 = scalar_lea.sflag [#allocation6], %s465
        %s467 = sand.u32 %s296, 1
        %s468 = smul.addr %s467, 8
        %s469 = scalar_lea.vmem [#allocation5], %s468
        %s470 = smul.u32 4, %s33
        %p471 = scmp.lt.s32.totalorder %s32, 1
        %s472 = scalar_select %p471, %s32, 1
        %p473 = scmp.lt.s32.totalorder %s470, 3
        %s474 = scalar_select %p473, %s470, 3
        %s475 = smul.addr %s472, 4
        %s476 = sadd.s32 %s474, %s475
        %s477 = smul.addr %s476, 8
        %s478 = scalar_lea.vmem %s0, %s477
        %s479 = smul.u32 4, %s33
        %p480 = scmp.lt.s32.totalorder %s32, 1
        %s481 = scalar_select %p480, %s32, 1
        %s482 = smul.addr %s481, 16
        %s483 = smul.addr %s482, 4
        %s484 = scalar_lea.vmem %s1, %s483
        %p485 = scmp.lt.s32.totalorder %s32, 1
        %s486 = scalar_select %p485, %s32, 1
        %s487 = smul.addr %s486, 4
        %s488 = scalar_lea.vmem %s2, %s487
        %p489 = scmp.lt.s32.totalorder %s32, 1
        %s490 = scalar_select %p489, %s32, 1
        %s491 = smul.addr %s490, 32
        %s492 = smul.addr %s491, 4
        %s493 = scalar_lea.vmem %s3, %s492
        %p494 = scmp.lt.s32.totalorder %s32, 1
        %s495 = scalar_select %p494, %s32, 1
        %s496 = smul.addr %s495, 4
        %s497 = smul.addr %s496, 4
        %s498 = scalar_lea.vmem %s4, %s497
        %p499 = scmp.lt.s32.totalorder %s32, 1
        %s500 = scalar_select %p499, %s32, 1
        %s501 = smul.addr %s500, 4
        %s502 = smul.addr %s501, 4
        %s503 = scalar_lea.vmem %s5, %s502
        %p504 = scmp.lt.s32.totalorder %s32, 1
        %s505 = scalar_select %p504, %s32, 1
        %s506 = smul.addr %s505, 4
        %s507 = scalar_lea.vmem %s6, %s506
        %s508 = smul.u32 4, %s33
        %s509 = smul.u32 4, %s33
        %p510 = scmp.lt.s32.totalorder %s32, 1
        %s511 = scalar_select %p510, %s32, 1
        %p512 = scmp.lt.s32.totalorder %s509, 3
        %s513 = scalar_select %p512, %s509, 3
        %s514 = smul.addr %s511, 4
        %s515 = sadd.s32 %s513, %s514
        %s516 = smul.addr %s515, 8
        %s517 = scalar_lea.vmem %s8, %s516
        %s518 = smul.u32 4, %s33
        %p520 = scmp.eq.s32.totalorder %s34, 0
        // Predicated region
        $region49: #{tpu_custom_call.1} parent=47 // pred_check
          %p521 = pneg %p520
        $region50: #{tpu_custom_call.1} parent=47 // pred_check_branch
          %523 = sbr.rel (%p521) target = $region52
        $region51: #{tpu_custom_call.1} parent=47 // pred_region
          %v524 = vld [vmem:[%s478] sm:$0xff]
          %v525 = vld [vmem:[%s478 + $0x8] sm:$0xff]
          %v526 = vld [vmem:[%s478 + $0x10] sm:$0xff]
          %v527 = vld [vmem:[%s478 + $0x18] sm:$0xff]
          %vm528 = vcmask 261120
          %529 = vst.msk [vmem:[#allocation2] sm:$0xff] %vm528, %v524
          %530 = vst.msk [vmem:[#allocation2 + $0x8] sm:$0xff] %vm528, %v525
          %531 = vst.msk [vmem:[#allocation2 + $0x10] sm:$0xff] %vm528, %v526
          %532 = vst.msk [vmem:[#allocation2 + $0x18] sm:$0xff] %vm528, %v527
          %533 = vst.msk [vmem:[%s451] sm:$0xff] %vm528, 0.0
          %534 = vst.msk [vmem:[%s451 + $0x8] sm:$0xff] %vm528, 0.0
          %535 = vst.msk [vmem:[%s451 + $0x10] sm:$0xff] %vm528, 0.0
          %536 = vst.msk [vmem:[%s451 + $0x18] sm:$0xff] %vm528, 0.0
          %vm537 = vcmask 31744
          %538 = vst.msk [vmem:[%s517] sm:$0xff] %vm537, 0
          %539 = vst.msk [vmem:[%s517 + $0x8] sm:$0xff] %vm537, 0
          %540 = vst.msk [vmem:[%s517 + $0x10] sm:$0xff] %vm537, 0
          %541 = vst.msk [vmem:[%s517 + $0x18] sm:$0xff] %vm537, 0
          %542 = vst [vmem:[%s469] sm:$0xff] 0.0
        $region52: #{tpu_custom_call.1} parent=47 // pred_fallthru
          _
        %v543 = vld [vmem:[#allocation2] sm:$0xff]
        %v544 = vld [vmem:[#allocation2 + $0x8] sm:$0xff]
        %v545 = vld [vmem:[#allocation2 + $0x10] sm:$0xff]
        %v546 = vld [vmem:[#allocation2 + $0x18] sm:$0xff]
        %v547 = vpack.c.bf16 %v544, %v543
        %v548 = vpack.c.bf16 %v546, %v545
        %s549 = smul.u32 %s34, 4
        %s550 = smul.addr %s549, 4
        %s551 = scalar_lea.vmem %s484, %s550
        %v552 = vld [vmem:[%s551] sm:$0xf]
        %v553 = vld [vmem:[%s551 + $0x4] sm:$0xf]
        %v554 = vld [vmem:[%s551 + $0x8] sm:$0xf]
        %v555 = vld [vmem:[%s551 + $0xc] sm:$0xf]
        %s556 = scalar_lea.vmem %s488, %s34
        %v557 = vld [vmem:[%s556] sm:$0x1]
        %v559 = vlaneseq
        %v560 = vshrl.u32 %v559, 7
        %v561 = vsub.s32 0, %v560
        %v562 = vrot.slane %v557, %v561
        %v568 = vunpack.c.l.b16 %v552
        %v569 = vunpack.c.l.b16 %v553
        %v570 = vunpack.c.l.b16 %v554
        %v571 = vunpack.c.l.b16 %v555
        %v572 = vpack.c.b16 %v569, %v568
        %v573 = vpack.c.b16 %v571, %v570
        %vm576 = vcmask 261120
        %v578 = vsel %vm576, %v547, 0
        %v581 = vsel %vm576, %v548, 0
        %583 = vmatprep.subr.bf16.mxu0 0
        %584 = vmatpush1.bf16.msra.mxu0 %v572
        %585 = vmatprep.subr.bf16.mxu0 0
        %586 = vmatpush1.bf16.msra.mxu0 %v573
        %587 = vmatprep.subr.bf16.mxu0 0
        %588 = vmatpush1.bf16.msra.mxu0 0
        %589 = vmatprep.subr.bf16.mxu0 0
        %590 = vmatpush1.bf16.msra.mxu0 0
        %591 = vmatprep.subr.bf16.mxu0 0
        %592 = vmatpush1.bf16.msra.mxu0 0
        %593 = vmatprep.subr.bf16.mxu0 0
        %594 = vmatpush1.bf16.msra.mxu0 0
        %595 = vmatprep.subr.bf16.mxu0 0
        %596 = vmatpush1.bf16.msra.mxu0 0
        %597 = vmatprep.subr.bf16.mxu0 0
        %598 = vmatpush1.bf16.msra.mxu0 0
        %599 = vmatprep.subr.bf16.mxu0 0
        %600 = vmatpush1.bf16.msra.mxu0 0
        %601 = vmatprep.subr.bf16.mxu0 0
        %602 = vmatpush1.bf16.msra.mxu0 0
        %603 = vmatprep.subr.bf16.mxu0 0
        %604 = vmatpush1.bf16.msra.mxu0 0
        %605 = vmatprep.subr.bf16.mxu0 0
        %606 = vmatpush1.bf16.msra.mxu0 0
        %607 = vmatprep.subr.bf16.mxu0 0
        %608 = vmatpush1.bf16.msra.mxu0 0
        %609 = vmatprep.subr.bf16.mxu0 0
        %610 = vmatpush1.bf16.msra.mxu0 0
        %611 = vmatprep.subr.bf16.mxu0 0
        %612 = vmatpush1.bf16.msra.mxu0 0
        %613 = vmatprep.subr.bf16.mxu0 0
        %614 = vmatpush1.bf16.msra.mxu0 0
        %615 = vmatprep.mubr.bf16.mxu0 0
        %616 = vmatmul.mubr.bf16.gmra.mrb[0].mxu0 %v578
        %v617 = vpop.f32.mrb[0].mxu0
        %v618 = vadd.f32 %v562, %v617
        %v619 = vpop.f32.mrb[0].mxu0
        %v620 = vpop.f32.mrb[0].mxu0
        %v621 = vadd.f32 %v562, %v620
        %v622 = vpop.f32.mrb[0].mxu0
        %623 = vmatprep.mubr.bf16.mxu0 0
        %624 = vmatmul.mubr.bf16.gmra.mrb[0].mxu0 %v581
        %v625 = vpop.f32.mrb[0].mxu0
        %v626 = vadd.f32 %v562, %v625
        %v627 = vpop.f32.mrb[0].mxu0
        %v628 = vpop.f32.mrb[0].mxu0
        %v629 = vadd.f32 %v562, %v628
        %v630 = vpop.f32.mrb[0].mxu0
        %631 = vdwg.mxu0
        %v632 = vpack.c.bf16 %v621, %v618
        %v633 = vpack.c.bf16 %v629, %v626
        %s634 = smul.addr %s34, 4
        %s635 = scalar_lea.vmem %s498, %s634
        %v636 = vld [vmem:[%s635] sm:$0xf]
        %vm637 = vcmask 64512
        %v639 = vsel %vm637, %v632, 0
        %v642 = vsel %vm637, %v633, 0
        %vm644 = vcmask 1043456
        %v646 = vsel %vm644, %v636, 0
        %648 = vmatprep.subr.bf16.mxu0 0
        %649 = vmatpush1.bf16.msra.mxu0 %v646
        %650 = vmatprep.subr.bf16.mxu0 0
        %651 = vmatpush1.bf16.msra.mxu0 0
        %652 = vmatprep.subr.bf16.mxu0 0
        %653 = vmatpush1.bf16.msra.mxu0 0
        %654 = vmatprep.subr.bf16.mxu0 0
        %655 = vmatpush1.bf16.msra.mxu0 0
        %656 = vmatprep.subr.bf16.mxu0 0
        %657 = vmatpush1.bf16.msra.mxu0 0
        %658 = vmatprep.subr.bf16.mxu0 0
        %659 = vmatpush1.bf16.msra.mxu0 0
        %660 = vmatprep.subr.bf16.mxu0 0
        %661 = vmatpush1.bf16.msra.mxu0 0
        %662 = vmatprep.subr.bf16.mxu0 0
        %663 = vmatpush1.bf16.msra.mxu0 0
        %664 = vmatprep.subr.bf16.mxu0 0
        %665 = vmatpush1.bf16.msra.mxu0 0
        %666 = vmatprep.subr.bf16.mxu0 0
        %667 = vmatpush1.bf16.msra.mxu0 0
        %668 = vmatprep.subr.bf16.mxu0 0
        %669 = vmatpush1.bf16.msra.mxu0 0
        %670 = vmatprep.subr.bf16.mxu0 0
        %671 = vmatpush1.bf16.msra.mxu0 0
        %672 = vmatprep.subr.bf16.mxu0 0
        %673 = vmatpush1.bf16.msra.mxu0 0
        %674 = vmatprep.subr.bf16.mxu0 0
        %675 = vmatpush1.bf16.msra.mxu0 0
        %676 = vmatprep.subr.bf16.mxu0 0
        %677 = vmatpush1.bf16.msra.mxu0 0
        %678 = vmatprep.subr.bf16.mxu0 0
        %679 = vmatpush1.bf16.msra.mxu0 0
        %680 = vmatprep.mubr.bf16.mxu0 0
        %681 = vmatmul.mubr.bf16.gmra.mrb[0].mxu0 %v639
        %v682 = vpop.f32.mrb[0].mxu0
        %v683 = vadd.f32 0.0, %v682
        %v684 = vpop.f32.mrb[0].mxu0
        %v685 = vpop.f32.mrb[0].mxu0
        %v686 = vadd.f32 0.0, %v685
        %v687 = vpop.f32.mrb[0].mxu0
        %688 = vmatprep.mubr.bf16.mxu0 0
        %689 = vmatmul.mubr.bf16.gmra.mrb[0].mxu0 %v642
        %v690 = vpop.f32.mrb[0].mxu0
        %v691 = vadd.f32 0.0, %v690
        %v692 = vpop.f32.mrb[0].mxu0
        %v693 = vpop.f32.mrb[0].mxu0
        %v694 = vadd.f32 0.0, %v693
        %v695 = vpop.f32.mrb[0].mxu0
        %696 = vdwg.mxu0
        %v697 = vlaneseq
        %v698 = vand.u32 %v697, 127
        %vm699 = vcmask 523264
        %v700 = vsel %vm699, %v683, -inf
        %701 = vmax.xlane.f32.xlu0 %v700
        %v702 = vpop.xlane.xlu0 %701
        %v703 = vsel %vm699, %v686, -inf
        %704 = vmax.xlane.f32.xlu0 %v703
        %v705 = vpop.xlane.xlu0 %704
        %v706 = vsel %vm699, %v691, -inf
        %707 = vmax.xlane.f32.xlu0 %v706
        %v708 = vpop.xlane.xlu0 %707
        %v709 = vsel %vm699, %v694, -inf
        %710 = vmax.xlane.f32.xlu0 %v709
        %v711 = vpop.xlane.xlu0 %710
        %vm712 = vcmp.eq.f32.partialorder %v683, %v702
        %vm713 = vcmp.eq.f32.partialorder %v686, %v705
        %vm714 = vcmp.eq.f32.partialorder %v691, %v708
        %vm715 = vcmp.eq.f32.partialorder %v694, %v711
        %v716 = vsel %vm712, %v698, 64
        %v717 = vsel %vm713, %v698, 64
        %v718 = vsel %vm714, %v698, 64
        %v719 = vsel %vm715, %v698, 64
        %v720 = vsel %vm699, %v716, 2147483647
        %v721 = vand.u32 %v720, 65535
        %v722 = vshra.s32 %v720, 16
        %v723 = vcvt.s32.f32 %v721
        %v724 = vcvt.s32.f32 %v722
        %725 = vmin.xlane.f32.xlu0 %v724
        %v726 = vpop.xlane.xlu0 %725
        %vm727 = vcmp.eq.f32.partialorder %v724, %v726
        %v728 = vsel %vm727, %v723, inf
        %729 = vmin.xlane.f32.xlu0 %v728
        %v730 = vpop.xlane.xlu0 %729
        %v731 = vcvt.f32.s32 %v730
        %v732 = vcvt.f32.s32 %v726
        %v733 = vshll.u32 %v732, 16
        %v734 = vadd.s32 %v733, %v731
        %v735 = vsel %vm699, %v717, 2147483647
        %v736 = vand.u32 %v735, 65535
        %v737 = vshra.s32 %v735, 16
        %v738 = vcvt.s32.f32 %v736
        %v739 = vcvt.s32.f32 %v737
        %740 = vmin.xlane.f32.xlu0 %v739
        %v741 = vpop.xlane.xlu0 %740
        %vm742 = vcmp.eq.f32.partialorder %v739, %v741
        %v743 = vsel %vm742, %v738, inf
        %744 = vmin.xlane.f32.xlu0 %v743
        %v745 = vpop.xlane.xlu0 %744
        %v746 = vcvt.f32.s32 %v745
        %v747 = vcvt.f32.s32 %v741
        %v748 = vshll.u32 %v747, 16
        %v749 = vadd.s32 %v748, %v746
        %v750 = vsel %vm699, %v718, 2147483647
        %v751 = vand.u32 %v750, 65535
        %v752 = vshra.s32 %v750, 16
        %v753 = vcvt.s32.f32 %v751
        %v754 = vcvt.s32.f32 %v752
        %755 = vmin.xlane.f32.xlu0 %v754
        %v756 = vpop.xlane.xlu0 %755
        %vm757 = vcmp.eq.f32.partialorder %v754, %v756
        %v758 = vsel %vm757, %v753, inf
        %759 = vmin.xlane.f32.xlu0 %v758
        %v760 = vpop.xlane.xlu0 %759
        %v761 = vcvt.f32.s32 %v760
        %v762 = vcvt.f32.s32 %v756
        %v763 = vshll.u32 %v762, 16
        %v764 = vadd.s32 %v763, %v761
        %v765 = vsel %vm699, %v719, 2147483647
        %v766 = vand.u32 %v765, 65535
        %v767 = vshra.s32 %v765, 16
        %v768 = vcvt.s32.f32 %v766
        %v769 = vcvt.s32.f32 %v767
        %770 = vmin.xlane.f32.xlu0 %v769
        %v771 = vpop.xlane.xlu0 %770
        %vm772 = vcmp.eq.f32.partialorder %v769, %v771
        %v773 = vsel %vm772, %v768, inf
        %774 = vmin.xlane.f32.xlu0 %v773
        %v775 = vpop.xlane.xlu0 %774
        %v776 = vcvt.f32.s32 %v775
        %v777 = vcvt.f32.s32 %v771
        %v778 = vshll.u32 %v777, 16
        %v779 = vadd.s32 %v778, %v776
        %vm780 = vcmp.eq.s32.totalorder %v698, %v734
        %vm781 = vcmp.eq.s32.totalorder %v698, %v749
        %vm782 = vcmp.eq.s32.totalorder %v698, %v764
        %vm783 = vcmp.eq.s32.totalorder %v698, %v779
        %v784 = vsel %vm780, 1, 0
        %v785 = vsel %vm781, 1, 0
        %v786 = vsel %vm782, 1, 0
        %v787 = vsel %vm783, 1, 0
        %v788 = vcvt.s32.f32 %v784
        %v789 = vcvt.s32.f32 %v785
        %v790 = vcvt.s32.f32 %v786
        %v791 = vcvt.s32.f32 %v787
        %v792 = vpack.c.bf16 %v789, %v788
        %v793 = vpack.c.bf16 %v791, %v790
        %s794 = smul.u32 %s34, 8
        %s795 = smul.addr %s794, 4
        %s796 = scalar_lea.vmem %s493, %s795
        %v797 = vld [vmem:[%s796] sm:$0xf]
        %v798 = vld [vmem:[%s796 + $0x4] sm:$0xf]
        %v799 = vld [vmem:[%s796 + $0x8] sm:$0xf]
        %v800 = vld [vmem:[%s796 + $0xc] sm:$0xf]
        %v801 = vld [vmem:[%s796 + $0x10] sm:$0xf]
        %v802 = vld [vmem:[%s796 + $0x14] sm:$0xf]
        %v803 = vld [vmem:[%s796 + $0x18] sm:$0xf]
        %v804 = vld [vmem:[%s796 + $0x1c] sm:$0xf]
        %v813 = vunpack.c.l.b16 %v797
        %v814 = vunpack.c.l.b16 %v798
        %v815 = vunpack.c.l.b16 %v799
        %v816 = vunpack.c.l.b16 %v800
        %v817 = vunpack.c.l.b16 %v801
        %v818 = vunpack.c.l.b16 %v802
        %v819 = vunpack.c.l.b16 %v803
        %v820 = vunpack.c.l.b16 %v804
        %v821 = vpack.c.b16 %v814, %v813
        %v822 = vpack.c.b16 %v816, %v815
        %v823 = vpack.c.b16 %v818, %v817
        %v824 = vpack.c.b16 %v820, %v819
        %v830 = vsel %vm699, %v792, 0
        %v833 = vsel %vm699, %v793, 0
        %835 = vmatprep.subr.bf16.mxu0 0
        %836 = vmatpush1.bf16.msra.mxu0 %v821
        %837 = vmatprep.subr.bf16.mxu0 0
        %838 = vmatpush1.bf16.msra.mxu0 %v822
        %839 = vmatprep.subr.bf16.mxu0 0
        %840 = vmatpush1.bf16.msra.mxu0 %v823
        %841 = vmatprep.subr.bf16.mxu0 0
        %842 = vmatpush1.bf16.msra.mxu0 %v824
        %843 = vmatprep.subr.bf16.mxu0 0
        %844 = vmatpush1.bf16.msra.mxu0 0
        %845 = vmatprep.subr.bf16.mxu0 0
        %846 = vmatpush1.bf16.msra.mxu0 0
        %847 = vmatprep.subr.bf16.mxu0 0
        %848 = vmatpush1.bf16.msra.mxu0 0
        %849 = vmatprep.subr.bf16.mxu0 0
        %850 = vmatpush1.bf16.msra.mxu0 0
        %851 = vmatprep.subr.bf16.mxu0 0
        %852 = vmatpush1.bf16.msra.mxu0 0
        %853 = vmatprep.subr.bf16.mxu0 0
        %854 = vmatpush1.bf16.msra.mxu0 0
        %855 = vmatprep.subr.bf16.mxu0 0
        %856 = vmatpush1.bf16.msra.mxu0 0
        %857 = vmatprep.subr.bf16.mxu0 0
        %858 = vmatpush1.bf16.msra.mxu0 0
        %859 = vmatprep.subr.bf16.mxu0 0
        %860 = vmatpush1.bf16.msra.mxu0 0
        %861 = vmatprep.subr.bf16.mxu0 0
        %862 = vmatpush1.bf16.msra.mxu0 0
        %863 = vmatprep.subr.bf16.mxu0 0
        %864 = vmatpush1.bf16.msra.mxu0 0
        %865 = vmatprep.subr.bf16.mxu0 0
        %866 = vmatpush1.bf16.msra.mxu0 0
        %867 = vmatprep.mubr.bf16.mxu0 0
        %868 = vmatmul.mubr.bf16.gmra.mrb[0].mxu0 %v830
        %v869 = vpop.f32.mrb[0].mxu0
        %v870 = vadd.f32 0.0, %v869
        %v871 = vpop.f32.mrb[0].mxu0
        %v872 = vpop.f32.mrb[0].mxu0
        %v873 = vadd.f32 0.0, %v872
        %v874 = vpop.f32.mrb[0].mxu0
        %875 = vmatprep.mubr.bf16.mxu0 0
        %876 = vmatmul.mubr.bf16.gmra.mrb[0].mxu0 %v833
        %v877 = vpop.f32.mrb[0].mxu0
        %v878 = vadd.f32 0.0, %v877
        %v879 = vpop.f32.mrb[0].mxu0
        %v880 = vpop.f32.mrb[0].mxu0
        %v881 = vadd.f32 0.0, %v880
        %v882 = vpop.f32.mrb[0].mxu0
        %883 = vdwg.mxu0
        %v884 = vsub.f32 %v618, %v870
        %v885 = vsub.f32 %v621, %v873
        %v886 = vsub.f32 %v626, %v878
        %v887 = vsub.f32 %v629, %v881
        %v888 = vmul.f32 %v884, %v884
        %v889 = vmul.f32 %v885, %v885
        %v890 = vmul.f32 %v886, %v886
        %v891 = vmul.f32 %v887, %v887
        %v892 = vsel %vm637, %v888, 0.0
        %893 = vadd.xlane.f32.xlu0 %v892
        %v894 = vpop.xlane.xlu0 %893
        %v895 = vsel %vm637, %v889, 0.0
        %896 = vadd.xlane.f32.xlu0 %v895
        %v897 = vpop.xlane.xlu0 %896
        %v898 = vsel %vm637, %v890, 0.0
        %899 = vadd.xlane.f32.xlu0 %v898
        %v900 = vpop.xlane.xlu0 %899
        %v901 = vsel %vm637, %v891, 0.0
        %902 = vadd.xlane.f32.xlu0 %v901
        %v903 = vpop.xlane.xlu0 %902
        %v904 = vadd.f32 %v894, %v897
        %v905 = vadd.f32 %v904, %v900
        %v906 = vadd.f32 %v905, %v903
        %v907 = vrot.slane %v906, 4
        %v908 = vadd.f32 %v906, %v907
        %v909 = vrot.slane %v908, 2
        %v910 = vadd.f32 %v908, %v909
        %v911 = vrot.slane %v910, 1
        %v912 = vadd.f32 %v910, %v911
        %v913 = vpack.c.bf16 %v873, %v870
        %v914 = vpack.c.bf16 %v881, %v878
        %s915 = smul.addr %s34, 4
        %s916 = scalar_lea.vmem %s503, %s915
        %v917 = vld [vmem:[%s916] sm:$0xf]
        %s918 = scalar_lea.vmem %s507, %s34
        %v919 = vld [vmem:[%s918] sm:$0x1]
        %v921 = vlaneseq
        %v922 = vshrl.u32 %v921, 7
        %v923 = vsub.s32 0, %v922
        %v924 = vrot.slane %v919, %v923
        %v927 = vsel %vm637, %v913, 0
        %v930 = vsel %vm637, %v914, 0
        %v933 = vsel %vm644, %v917, 0
        %935 = vmatprep.subr.bf16.mxu0 0
        %936 = vmatpush1.bf16.msra.mxu0 %v933
        %937 = vmatprep.subr.bf16.mxu0 0
        %938 = vmatpush1.bf16.msra.mxu0 0
        %939 = vmatprep.subr.bf16.mxu0 0
        %940 = vmatpush1.bf16.msra.mxu0 0
        %941 = vmatprep.subr.bf16.mxu0 0
        %942 = vmatpush1.bf16.msra.mxu0 0
        %943 = vmatprep.subr.bf16.mxu0 0
        %944 = vmatpush1.bf16.msra.mxu0 0
        %945 = vmatprep.subr.bf16.mxu0 0
        %946 = vmatpush1.bf16.msra.mxu0 0
        %947 = vmatprep.subr.bf16.mxu0 0
        %948 = vmatpush1.bf16.msra.mxu0 0
        %949 = vmatprep.subr.bf16.mxu0 0
        %950 = vmatpush1.bf16.msra.mxu0 0
        %951 = vmatprep.subr.bf16.mxu0 0
        %952 = vmatpush1.bf16.msra.mxu0 0
        %953 = vmatprep.subr.bf16.mxu0 0
        %954 = vmatpush1.bf16.msra.mxu0 0
        %955 = vmatprep.subr.bf16.mxu0 0
        %956 = vmatpush1.bf16.msra.mxu0 0
        %957 = vmatprep.subr.bf16.mxu0 0
        %958 = vmatpush1.bf16.msra.mxu0 0
        %959 = vmatprep.subr.bf16.mxu0 0
        %960 = vmatpush1.bf16.msra.mxu0 0
        %961 = vmatprep.subr.bf16.mxu0 0
        %962 = vmatpush1.bf16.msra.mxu0 0
        %963 = vmatprep.subr.bf16.mxu0 0
        %964 = vmatpush1.bf16.msra.mxu0 0
        %965 = vmatprep.subr.bf16.mxu0 0
        %966 = vmatpush1.bf16.msra.mxu0 0
        %967 = vmatprep.mubr.bf16.mxu0 0
        %968 = vmatmul.mubr.bf16.gmra.mrb[0].mxu0 %v927
        %v969 = vpop.f32.mrb[0].mxu0
        %v970 = vadd.f32 %v924, %v969
        %v971 = vpop.f32.mrb[0].mxu0
        %v972 = vpop.f32.mrb[0].mxu0
        %v973 = vadd.f32 %v924, %v972
        %v974 = vpop.f32.mrb[0].mxu0
        %975 = vmatprep.mubr.bf16.mxu0 0
        %976 = vmatmul.mubr.bf16.gmra.mrb[0].mxu0 %v930
        %v977 = vpop.f32.mrb[0].mxu0
        %v978 = vadd.f32 %v924, %v977
        %v979 = vpop.f32.mrb[0].mxu0
        %v980 = vpop.f32.mrb[0].mxu0
        %v981 = vadd.f32 %v924, %v980
        %v982 = vpop.f32.mrb[0].mxu0
        %983 = vdwg.mxu0
        %v984 = vstv %s34
        %vm985 = vcmp.eq.s32.totalorder %v698, %v984
        %v986 = vld [vmem:[%s517] sm:$0xff]
        %v987 = vld [vmem:[%s517 + $0x8] sm:$0xff]
        %v988 = vld [vmem:[%s517 + $0x10] sm:$0xff]
        %v989 = vld [vmem:[%s517 + $0x18] sm:$0xff]
        %v990 = vsel %vm985, %v734, %v986
        %v991 = vsel %vm985, %v749, %v987
        %v992 = vsel %vm985, %v764, %v988
        %v993 = vsel %vm985, %v779, %v989
        %vm994 = vcmask 31744
        %995 = vst.msk [vmem:[%s517] sm:$0xff] %vm994, %v990
        %996 = vst.msk [vmem:[%s517 + $0x8] sm:$0xff] %vm994, %v991
        %997 = vst.msk [vmem:[%s517 + $0x10] sm:$0xff] %vm994, %v992
        %998 = vst.msk [vmem:[%s517 + $0x18] sm:$0xff] %vm994, %v993
        %v999 = vld [vmem:[%s469] sm:$0xff]
        %v1000 = vsel %vm985, %v912, 0.0
        %v1001 = vadd.f32 %v999, %v1000
        %1002 = vst [vmem:[%s469] sm:$0xff] %v1001
        %v1003 = vld [vmem:[%s451] sm:$0xff]
        %v1004 = vld [vmem:[%s451 + $0x8] sm:$0xff]
        %v1005 = vld [vmem:[%s451 + $0x10] sm:$0xff]
        %v1006 = vld [vmem:[%s451 + $0x18] sm:$0xff]
        %v1007 = vadd.f32 %v1003, %v970
        %v1008 = vadd.f32 %v1004, %v973
        %v1009 = vadd.f32 %v1005, %v978
        %v1010 = vadd.f32 %v1006, %v981
        %1011 = vst.msk [vmem:[%s451] sm:$0xff] %vm576, %v1007
        %1012 = vst.msk [vmem:[%s451 + $0x8] sm:$0xff] %vm576, %v1008
        %1013 = vst.msk [vmem:[%s451 + $0x10] sm:$0xff] %vm576, %v1009
        %1014 = vst.msk [vmem:[%s451 + $0x18] sm:$0xff] %vm576, %v1010
        %v1015 = vsub.f32 %v543, %v970
        %v1016 = vsub.f32 %v544, %v973
        %v1017 = vsub.f32 %v545, %v978
        %v1018 = vsub.f32 %v546, %v981
        %1019 = vst.msk [vmem:[#allocation2] sm:$0xff] %vm576, %v1015
        %1020 = vst.msk [vmem:[#allocation2 + $0x8] sm:$0xff] %vm576, %v1016
        %1021 = vst.msk [vmem:[#allocation2 + $0x10] sm:$0xff] %vm576, %v1017
        %1022 = vst.msk [vmem:[#allocation2 + $0x18] sm:$0xff] %vm576, %v1018
        %s1023 = sand.u32 %s240, 1
        %s1024 = scalar_lea.sflag [#allocation4], %s1023
        %s1025 = sand.u32 %s240, 1
        %s1026 = smul.addr %s1025, 32
        %s1027 = scalar_lea.vmem [#allocation3], %s1026
        %s1028 = smul.u32 4, %s33
        %p1029 = scmp.lt.s32.totalorder %s32, 1
        %s1030 = scalar_select %p1029, %s32, 1
        %p1031 = scmp.lt.s32.totalorder %s1028, 3
        %s1032 = scalar_select %p1031, %s1028, 3
        %s1033 = smul.addr %s1030, 4
        %s1034 = sadd.s32 %s1032, %s1033
        %s1035 = smul.addr %s1034, 8
        %s1036 = scalar_lea.vmem %s8, %s1035
        %s1037 = sand.u32 %s296, 1
        %s1038 = scalar_lea.sflag [#allocation6], %s1037
        %s1039 = sand.u32 %s296, 1
        %s1040 = smul.addr %s1039, 8
        %s1041 = scalar_lea.vmem [#allocation5], %s1040
        // Predicated region
        $region53: #{tpu_custom_call.1} parent=47 // pred_check
          %p1042 = pneg %p250
        $region54: #{tpu_custom_call.1} parent=47 // pred_check_branch
          %1044 = sbr.rel (%p1042) target = $region56
        $region55: #{tpu_custom_call.1} parent=47 // pred_region
          %s1045 = smul.u32 4, %s33
          %s1047 = ssub.s32 512, 512
          %1048 = vsyncadd %s1024, %s1047
          %s1049 = smul.addr %s32, 4
          %s1050 = sadd.s32 %s1045, %s1049
          %s1051 = smul.addr %s1050, 128
          %s1052 = scalar_lea.hbm %s7, %s1051
          %s1053 = sshll.u32 %s1027, 4
          %s1054 = int_to_ptr.vmem [resolvable:$true] %s1053
          %1059 = dma.vmem_to_hbm [thread:$0]  %s1054, 512, %s1052, %s1024, 128, 128, 8
        $region56: #{tpu_custom_call.1} parent=47 // pred_fallthru
          _
        // Predicated region
        $region57: #{tpu_custom_call.1} parent=47 // pred_check
          %p1060 = pneg %p278
        $region58: #{tpu_custom_call.1} parent=47 // pred_check_branch
          %1062 = sbr.rel (%p1060) target = $region60
        $region59: #{tpu_custom_call.1} parent=47 // pred_region
          %s1063 = smul.u32 4, %s33
        $region60: #{tpu_custom_call.1} parent=47 // pred_fallthru
          _
        // Predicated region
        $region61: #{tpu_custom_call.1} parent=47 // pred_check
          %p1064 = pneg %p306
        $region62: #{tpu_custom_call.1} parent=47 // pred_check_branch
          %1066 = sbr.rel (%p1064) target = $region64
        $region63: #{tpu_custom_call.1} parent=47 // pred_region
          %s1068 = ssub.s32 128, 128
          %1069 = vsyncadd %s1038, %s1068
          %s1070 = sadd.s32 %s33, %s32
          %s1071 = smul.addr %s1070, 128
          %s1072 = scalar_lea.hbm %s9, %s1071
          %s1074 = sshll.u32 %s1041, 4
          %s1075 = int_to_ptr.vmem [resolvable:$true] %s1074
          %1077 = dma.vmem_to_hbm [thread:$0]  %s1075, 128, %s1072, %s1038
        $region64: #{tpu_custom_call.1} parent=47 // pred_fallthru
          _
      $region48: #{tpu_custom_call.1} parent=5 // pred_fallthru
        _
      %p1078 = scmp.le.s32.totalorder 2, %s22
      // Predicated region
      $region65: #{tpu_custom_call.1} parent=5 // pred_check
        %p1079 = pneg %p1078
      $region66: #{tpu_custom_call.1} parent=5 // pred_check_branch
        %1081 = sbr.rel (%p1079) target = $region68
      $region67: #{tpu_custom_call.1} parent=5 // pred_region
        %s1082 = ssub.s32 %s22, 2
        // Predicated region
        $region69: #{tpu_custom_call.1} parent=67 // pred_check
          %p1083 = pneg %p256
        $region70: #{tpu_custom_call.1} parent=67 // pred_check_branch
          %1085 = sbr.rel (%p1083) target = $region72
        $region71: #{tpu_custom_call.1} parent=67 // pred_region
          %s1086 = sand.u32 %s241, 1
          %s1087 = scalar_lea.sflag [#allocation4], %s1086
          %s1088 = sand.u32 %s241, 1
          %s1089 = smul.addr %s1088, 32
          %s1090 = scalar_lea.vmem [#allocation3], %s1089
          %1091 = dma.done %s1087, 512
        $region72: #{tpu_custom_call.1} parent=67 // pred_fallthru
          _
        // Predicated region
        $region73: #{tpu_custom_call.1} parent=67 // pred_check
          %p1092 = pneg %p284
        $region74: #{tpu_custom_call.1} parent=67 // pred_check_branch
          %1094 = sbr.rel (%p1092) target = $region76
        $region75: #{tpu_custom_call.1} parent=67 // pred_region
          %s1095 = smul.u32 4, %s36
          %p1096 = scmp.lt.s32.totalorder %s35, 1
          %s1097 = scalar_select %p1096, %s35, 1
          %p1098 = scmp.lt.s32.totalorder %s1095, 3
          %s1099 = scalar_select %p1098, %s1095, 3
          %s1100 = smul.addr %s1097, 4
          %s1101 = sadd.s32 %s1099, %s1100
          %s1102 = smul.addr %s1101, 8
          %s1103 = scalar_lea.vmem %s8, %s1102
        $region76: #{tpu_custom_call.1} parent=67 // pred_fallthru
          _
        // Predicated region
        $region77: #{tpu_custom_call.1} parent=67 // pred_check
          %p1104 = pneg %p312
        $region78: #{tpu_custom_call.1} parent=67 // pred_check_branch
          %1106 = sbr.rel (%p1104) target = $region80
        $region79: #{tpu_custom_call.1} parent=67 // pred_region
          %s1107 = sand.u32 %s297, 1
          %s1108 = scalar_lea.sflag [#allocation6], %s1107
          %s1109 = sand.u32 %s297, 1
          %s1110 = smul.addr %s1109, 8
          %s1111 = scalar_lea.vmem [#allocation5], %s1110
          %1112 = dma.done %s1108, 128
        $region80: #{tpu_custom_call.1} parent=67 // pred_fallthru
          _
      $region68: #{tpu_custom_call.1} parent=5 // pred_fallthru
        _
    $region6: #{tpu_custom_call.1} parent=1 // loop_footer
      %s26 = sadd.s32 1, %s22
    $region7: #{tpu_custom_call.1} parent=1 // loop_footer_branch
      %21 = sbr.rel target = $region3
    $region8: #{tpu_custom_call.1} parent=1 // loop_exit
      _
    %1113 = vsyncpa [#allocation4], 1
    %s1114 = scalar_lea.sflag [#allocation4], 1
    %1115 = vsyncpa %s1114, 1
    %1116 = vsyncpa [#allocation6], 1
    %s1117 = scalar_lea.sflag [#allocation6], 1
    %1118 = vsyncpa %s1117, 1

</llo_original>
